<compile_context>
chip_gen: v5e
topology: v5e:2x2
jax: 0.10.0
libtpu: 0.0.40
codegen_flags: <defaults>
</compile_context>

<pallas_src>
import functools

import jax
import jax.numpy as jnp
from jax import lax
from jax.experimental import pallas as pl
from jax.experimental.pallas import tpu as pltpu


# (C_in, C_out, kh, kw, sh, sw) for conv1/conv2/conv3 (matches the PyTorch module)
CONV_SPECS = [
    (3, 30, 5, 5, 5, 5),
    (30, 60, 5, 5, 2, 2),
    (60, 60, 3, 3, 1, 1),
]


def _vmem_spec():
    return pl.BlockSpec(memory_space=pltpu.MemorySpace.VMEM)


def _conv_stack_hw(h, w):
    dims = [(h, w)]
    for (_, _, kh, kw, sh, sw) in CONV_SPECS:
        h = (h - kh) // sh + 1
        w = (w - kw) // sw + 1
        dims.append((h, w))
    return dims  # [(H0,W0), (H1,W1), (H2,W2), (H3,W3)]


def conv_out_dims(input_dims):
    _, h, w = input_dims
    h3, w3 = _conv_stack_hw(h, w)[-1]
    return CONV_SPECS[-1][1] * h3 * w3


# --------------------------- Pallas kernel ----------------------------------

def make_fused_kernel(B, H2, W2, H3, W3):
    """Build the fused forward kernel for static batch/spatial sizes."""
    _, C1, _, _, _, _ = CONV_SPECS[0]
    _, C2, k2h, k2w, _, _ = CONV_SPECS[1]
    _, C3, k3h, k3w, s3h, s3w = CONV_SPECS[2]
    assert s3h == 1 and s3w == 1          # conv3 slicing scheme assumes stride 1
    n_tap2 = k2h * k2w                    # 25
    n2 = H2 * W2 * B                      # conv2-output rows, order (i2, j2, b)
    n3 = H3 * W3 * B                      # conv3-output rows, order (i3, j3, b)

    def kernel(p1_ref, w1_ref, b1_ref, w2_ref, b2_ref, w3_ref, b3_ref,
               wf1_ref, bf1_ref, wf2_ref, bf2_ref, wh_ref, bh_ref,
               out_ref, p2_ref, p3_ref, pf_ref):
        f32 = jnp.float32

        # ---- conv1: ONE matmul over all conv2-tap-duplicated input patches.
        # p1 rows ordered (u, v, i2, j2, b); bias + ReLU applied once.
        y1 = jnp.maximum(
            jnp.dot(p1_ref[...], w1_ref[...], preferred_element_type=f32)
            + b1_ref[...], 0.0)                                # (25*n2, C1)

        # ---- conv2: fold the 25 taps into the contraction (K) dimension.
        # p2 rows = (i2, j2, b), features = (u, v, c1)  ->  one K=750 matmul.
        for t in range(n_tap2):
            p2_ref[:, t * C1:(t + 1) * C1] = y1[t * n2:(t + 1) * n2, :]
        y2 = jnp.maximum(
            jnp.dot(p2_ref[...], w2_ref[...], preferred_element_type=f32)
            + b2_ref[...], 0.0)                                # (n2, C2)

        # ---- conv3: im2col of the overlapping 3x3 stride-1 windows via static
        # slices of y2; taps folded into K -> one K=540 matmul.
        # p3 rows = (i3, j3, b), features = (p, q, c2).
        for p in range(k3h):
            for q in range(k3w):
                col = (p * k3w + q) * C2
                for i3 in range(H3):
                    src = ((i3 + p) * W2 + q) * B
                    p3_ref[i3 * W3 * B:(i3 + 1) * W3 * B, col:col + C2] = \
                        y2[src:src + W3 * B, :]
        y3 = jnp.maximum(
            jnp.dot(p3_ref[...], w3_ref[...], preferred_element_type=f32)
            + b3_ref[...], 0.0)                                # (n3, C3)

        # ---- fc1: rows = batch, features = (i3, j3, c3); the PyTorch NCHW
        # flatten order is folded into the repacked fc1 weight.
        for s in range(H3 * W3):
            pf_ref[:, s * C3:(s + 1) * C3] = y3[s * B:(s + 1) * B, :]
        h = jnp.maximum(
            jnp.dot(pf_ref[...], wf1_ref[...], preferred_element_type=f32)
            + bf1_ref[...], 0.0)                               # (B, n_hidden)

        # ---- fc2 -> ReLU -> merged (fc3 ++ pen_status) lane-dense head.
        h = jnp.maximum(
            jnp.dot(h, wf2_ref[...], preferred_element_type=f32)
            + bf2_ref[...], 0.0)
        out_ref[...] = (jnp.dot(h, wh_ref[...], preferred_element_type=f32)
                        + bh_ref[...]).astype(out_ref.dtype)

    return kernel


# --------------------------- Wrapper / glue ----------------------------------

def prepare_kernel_params(params, input_hw):
    """One-time repacking of PyTorch-layout params into the fused-kernel layout."""
    (_, _), (H1, W1), (H2, W2), (H3, W3) = _conv_stack_hw(*input_hw)
    c1_in, c1_out, k1h, k1w, _, _ = CONV_SPECS[0]
    c2_in, c2_out, k2h, k2w, _, _ = CONV_SPECS[1]
    c3_in, c3_out, k3h, k3w, _, _ = CONV_SPECS[2]

    prep = {}
    # conv1: OIHW -> (Cin*kh*kw, Cout), feature order (c, kh, kw)
    prep["w1c"] = params["conv1_w"].reshape(c1_out, c1_in * k1h * k1w).T
    prep["b1c"] = params["conv1_b"].reshape(1, c1_out)
    # conv2/conv3: OIHW -> K-folded (kh*kw*Cin, Cout), row order (u, v, c_in)
    prep["w2c"] = jnp.transpose(params["conv2_w"], (2, 3, 1, 0)).reshape(
        k2h * k2w * c2_in, c2_out)
    prep["b2c"] = params["conv2_b"].reshape(1, c2_out)
    prep["w3c"] = jnp.transpose(params["conv3_w"], (2, 3, 1, 0)).reshape(
        k3h * k3w * c3_in, c3_out)
    prep["b3c"] = params["conv3_b"].reshape(1, c3_out)
    # fc1: fold the NCHW (c3, i3, j3) flatten order into kernel order (i3, j3, c3)
    n_hidden = params["w1"].shape[1]
    prep["wf1"] = params["w1"].reshape(c3_out, H3, W3, n_hidden) \
                              .transpose(1, 2, 0, 3) \
                              .reshape(H3 * W3 * c3_out, n_hidden)
    prep["bf1"] = params["b1"]
    prep["wf2"] = params["w2"]
    prep["bf2"] = params["b2"]
    # merged + lane-dense head: [fc3 | pen_status], zero-padded to a multiple of 128
    wh = jnp.concatenate([params["w3"], params["wp"]], axis=1)
    bh = jnp.concatenate([params["b3"], params["bp"]], axis=1)
    n_real = wh.shape[1]
    n_pad = ((n_real + 127) // 128) * 128
    prep["wh"] = jnp.pad(wh, ((0, 0), (0, n_pad - n_real)))
    prep["bh"] = jnp.pad(bh, ((0, 0), (0, n_pad - n_real)))
    return prep


@functools.partial(jax.jit, static_argnames=("output_n",))
def forward(x, prep, output_n):
    B, C0, H0, W0 = x.shape
    (_, _), (H1, W1), (H2, W2), (H3, W3) = _conv_stack_hw(H0, W0)
    _, C1, k1h, k1w, s1h, s1w = CONV_SPECS[0]
    _, C2, k2h, k2w, s2h, s2w = CONV_SPECS[1]
    _, C3, k3h, k3w, _, _ = CONV_SPECS[2]
    K1 = C0 * k1h * k1w

    # conv1 has kernel == stride: im2col is a pure space-to-depth reshape.
    xc = x[:, :, :H1 * s1h, :W1 * s1w]
    patches = xc.reshape(B, C0, H1, k1h, W1, k1w).transpose(2, 4, 0, 1, 3, 5)
    patches = patches.reshape(H1, W1, B, K1)               # (H1, W1, B, 75)

    # conv2-tap im2col at the conv1-INPUT-patch level: one strided window slice
    # per tap (u, v) — structured slicing, no general gather; duplication is
    # only 25*H2*W2/(H1*W1) ≈ 2.8x (conv3 taps are realized in-kernel).
    taps = []
    for u in range(k2h):
        for v in range(k2w):
            blk = patches[u:u + s2h * (H2 - 1) + 1:s2h,
                          v:v + s2w * (W2 - 1) + 1:s2w]     # (H2, W2, B, 75)
            taps.append(blk.reshape(H2 * W2 * B, K1))
    p1 = jnp.concatenate(taps, axis=0)                      # (25*H2*W2*B, 75)

    n_pad = prep["wh"].shape[1]
    kernel = make_fused_kernel(B, H2, W2, H3, W3)
    # NOTE: grid-less on purpose at tiny batch; for large B add a "parallel"
    # batch grid (v7x dual TC, v5e/v6e DMA pipelining, v7x 64 MiB VMEM headroom).
    out = pl.pallas_call(
        kernel,
        out_shape=jax.ShapeDtypeStruct((B, n_pad), jnp.float32),
        in_specs=[_vmem_spec()] * 13,
        out_specs=_vmem_spec(),
        scratch_shapes=[
            pltpu.VMEM((H2 * W2 * B, k2h * k2w * C1), jnp.float32),  # conv2 K-fold
            pltpu.VMEM((H3 * W3 * B, k3h * k3w * C2), jnp.float32),  # conv3 K-fold
            pltpu.VMEM((B, H3 * W3 * C3), jnp.float32),              # fc1 input
        ],
    )(p1, prep["w1c"], prep["b1c"], prep["w2c"], prep["b2c"],
      prep["w3c"], prep["b3c"], prep["wf1"], prep["bf1"],
      prep["wf2"], prep["bf2"], prep["wh"], prep["bh"])

    actions = out[:, :output_n]
    pen_out = out[:, output_n:output_n + 2]
    return actions, pen_out


# --------------------------- Params & reference ------------------------------

def init_params(key, input_dims, output_n, n_hidden):
    params = {}
    keys = jax.random.split(key, 16)
    ki = iter(range(16))

    def uni(k, shape, fan_in):
        bound = 1.0 / jnp.sqrt(jnp.float32(fan_in))
        return jax.random.uniform(k, shape, jnp.float32, -bound, bound)

    for idx, (c_in, c_out, kh, kw, _, _) in enumerate(CONV_SPECS, start=1):
        fan_in = c_in * kh * kw
        params[f"conv{idx}_w"] = uni(keys[next(ki)], (c_out, c_in, kh, kw), fan_in)
        params[f"conv{idx}_b"] = uni(keys[next(ki)], (c_out,), fan_in)

    fc_in = conv_out_dims(input_dims)
    for name, (din, dout) in {
        "1": (fc_in, n_hidden),
        "2": (n_hidden, n_hidden),
        "3": (n_hidden, output_n),
        "p": (n_hidden, 2),
    }.items():
        params[f"w{name}"] = uni(keys[next(ki)], (din, dout), din)   # (in, out)
        params[f"b{name}"] = uni(keys[next(ki)], (1, dout), din)
    return params


def reference_forward(x, params):
    """Pure-JAX reference (lax conv) for validation."""
    hp = lax.Precision.HIGHEST
    h = x
    for idx, (_, _, _, _, sh, sw) in enumerate(CONV_SPECS, start=1):
        w = params[f"conv{idx}_w"]
        b = params[f"conv{idx}_b"]
        h = lax.conv_general_dilated(h, w, (sh, sw), "VALID",
                                     dimension_numbers=("NCHW", "OIHW", "NCHW"),
                                     precision=hp)
        h = jnp.maximum(h + b[None, :, None, None], 0.0)
    f = h.reshape(h.shape[0], -1)
    h1 = jnp.maximum(jnp.dot(f, params["w1"], precision=hp) + params["b1"], 0.0)
    h2 = jnp.maximum(jnp.dot(h1, params["w2"], precision=hp) + params["b2"], 0.0)
    return (jnp.dot(h2, params["w3"], precision=hp) + params["b3"],
            jnp.dot(h2, params["wp"], precision=hp) + params["bp"])


# TODO(synk): optimizer / MSE loss / checkpoint save-load from the PyTorch class
# are host-side training utilities with no kernel equivalent; only forward() is
# implemented here.

if __name__ == "__main__":
    key = jax.random.PRNGKey(0)
    k_x, k_p = jax.random.split(key)

    input_dims = (3, 60, 60)   # (C, H, W): conv stack -> (60, 2, 2) -> fc_in = 240
    batch = 2
    output_n = 4
    n_hidden = 64

    x = jax.random.normal(k_x, (batch, *input_dims), jnp.float32)
    params = init_params(k_p, input_dims, output_n, n_hidden)
    prep = prepare_kernel_params(params, input_dims[1:])   # one-time repack

    actions, pen_out = forward(x, prep, output_n)
    actions = jax.block_until_ready(actions)
    pen_out = jax.block_until_ready(pen_out)

    ref_actions, ref_pen = reference_forward(x, params)
    assert actions.shape == (batch, output_n)
    assert pen_out.shape == (batch, 2)
    assert jnp.allclose(actions, ref_actions, rtol=5e-4, atol=5e-4), (
        float(jnp.max(jnp.abs(actions - ref_actions))))
    assert jnp.allclose(pen_out, ref_pen, rtol=5e-4, atol=5e-4), (
        float(jnp.max(jnp.abs(pen_out - ref_pen))))

    print("KERNEL_OK")
</pallas_src>

<mosaic_0001>
module attributes {stable_mosaic.version = 11 : i64} {
  func.func @kernel(%arg0: memref<800x75xf32, #tpu.memory_space<vmem>>, %arg1: memref<75x30xf32, #tpu.memory_space<vmem>>, %arg2: memref<1x30xf32, #tpu.memory_space<vmem>>, %arg3: memref<750x60xf32, #tpu.memory_space<vmem>>, %arg4: memref<1x60xf32, #tpu.memory_space<vmem>>, %arg5: memref<540x60xf32, #tpu.memory_space<vmem>>, %arg6: memref<1x60xf32, #tpu.memory_space<vmem>>, %arg7: memref<240x64xf32, #tpu.memory_space<vmem>>, %arg8: memref<1x64xf32, #tpu.memory_space<vmem>>, %arg9: memref<64x64xf32, #tpu.memory_space<vmem>>, %arg10: memref<1x64xf32, #tpu.memory_space<vmem>>, %arg11: memref<64x128xf32, #tpu.memory_space<vmem>>, %arg12: memref<1x128xf32, #tpu.memory_space<vmem>>, %arg13: memref<2x128xf32, #tpu.memory_space<vmem>>, %arg14: memref<32x750xf32, #tpu.memory_space<vmem>>, %arg15: memref<8x540xf32, #tpu.memory_space<vmem>>, %arg16: memref<2x240xf32, #tpu.memory_space<vmem>>) attributes {dimension_semantics = [], scalar_prefetch = 0 : i64, scratch_operands = 3 : i64, tpu.core_type = #tpu.core_type<tc>} {
    %c0 = arith.constant 0 : index
    %c0_0 = arith.constant 0 : index
    %0 = vector.load %arg0[%c0, %c0_0] : memref<800x75xf32, #tpu.memory_space<vmem>>, vector<800x75xf32>
    %c0_1 = arith.constant 0 : index
    %c0_2 = arith.constant 0 : index
    %1 = vector.load %arg1[%c0_1, %c0_2] : memref<75x30xf32, #tpu.memory_space<vmem>>, vector<75x30xf32>
    %cst = arith.constant dense<0.000000e+00> : vector<800x30xf32>
    %2 = tpu.matmul %0, %1, %cst {dimension_numbers = #tpu.dot_dimension_numbers<[1], [0], [0], [1], [0, 0, 1, 1], [], []>} : vector<800x75xf32>, vector<75x30xf32>, vector<800x30xf32> -> vector<800x30xf32>
    %c0_3 = arith.constant 0 : index
    %c0_4 = arith.constant 0 : index
    %3 = vector.load %arg2[%c0_3, %c0_4] : memref<1x30xf32, #tpu.memory_space<vmem>>, vector<1x30xf32>
    %4 = vector.broadcast %3 : vector<1x30xf32> to vector<800x30xf32>
    %5 = arith.addf %2, %4 : vector<800x30xf32>
    %cst_5 = arith.constant 0.000000e+00 : f32
    %6 = vector.broadcast %cst_5 : f32 to vector<800x30xf32>
    %7 = arith.maximumf %5, %6 : vector<800x30xf32>
    %8 = vector.extract_strided_slice %7 {offsets = [0, 0], sizes = [32, 30], strides = [1, 1]} : vector<800x30xf32> to vector<32x30xf32>
    %c0_6 = arith.constant 0 : index
    %c0_7 = arith.constant 0 : index
    %9 = vector.load %arg14[%c0_6, %c0_7] : memref<32x750xf32, #tpu.memory_space<vmem>>, vector<32x30xf32>
    tpu.vector_store %arg14[%c0_6, %c0_7], %8 {strides = array<i32>} : memref<32x750xf32, #tpu.memory_space<vmem>>, vector<32x30xf32>,
    %10 = vector.extract_strided_slice %7 {offsets = [32, 0], sizes = [32, 30], strides = [1, 1]} : vector<800x30xf32> to vector<32x30xf32>
    %c0_8 = arith.constant 0 : index
    %c30 = arith.constant 30 : index
    %11 = vector.load %arg14[%c0_8, %c30] : memref<32x750xf32, #tpu.memory_space<vmem>>, vector<32x30xf32>
    tpu.vector_store %arg14[%c0_8, %c30], %10 {strides = array<i32>} : memref<32x750xf32, #tpu.memory_space<vmem>>, vector<32x30xf32>,
    %12 = vector.extract_strided_slice %7 {offsets = [64, 0], sizes = [32, 30], strides = [1, 1]} : vector<800x30xf32> to vector<32x30xf32>
    %c0_9 = arith.constant 0 : index
    %c60 = arith.constant 60 : index
    %13 = vector.load %arg14[%c0_9, %c60] : memref<32x750xf32, #tpu.memory_space<vmem>>, vector<32x30xf32>
    tpu.vector_store %arg14[%c0_9, %c60], %12 {strides = array<i32>} : memref<32x750xf32, #tpu.memory_space<vmem>>, vector<32x30xf32>,
    %14 = vector.extract_strided_slice %7 {offsets = [96, 0], sizes = [32, 30], strides = [1, 1]} : vector<800x30xf32> to vector<32x30xf32>
    %c0_10 = arith.constant 0 : index
    %c90 = arith.constant 90 : index
    %15 = vector.load %arg14[%c0_10, %c90] : memref<32x750xf32, #tpu.memory_space<vmem>>, vector<32x30xf32>
    tpu.vector_store %arg14[%c0_10, %c90], %14 {strides = array<i32>} : memref<32x750xf32, #tpu.memory_space<vmem>>, vector<32x30xf32>,
    %16 = vector.extract_strided_slice %7 {offsets = [128, 0], sizes = [32, 30], strides = [1, 1]} : vector<800x30xf32> to vector<32x30xf32>
    %c0_11 = arith.constant 0 : index
    %c120 = arith.constant 120 : index
    %17 = vector.load %arg14[%c0_11, %c120] : memref<32x750xf32, #tpu.memory_space<vmem>>, vector<32x30xf32>
    tpu.vector_store %arg14[%c0_11, %c120], %16 {strides = array<i32>} : memref<32x750xf32, #tpu.memory_space<vmem>>, vector<32x30xf32>,
    %18 = vector.extract_strided_slice %7 {offsets = [160, 0], sizes = [32, 30], strides = [1, 1]} : vector<800x30xf32> to vector<32x30xf32>
    %c0_12 = arith.constant 0 : index
    %c150 = arith.constant 150 : index
    %19 = vector.load %arg14[%c0_12, %c150] : memref<32x750xf32, #tpu.memory_space<vmem>>, vector<32x30xf32>
    tpu.vector_store %arg14[%c0_12, %c150], %18 {strides = array<i32>} : memref<32x750xf32, #tpu.memory_space<vmem>>, vector<32x30xf32>,
    %20 = vector.extract_strided_slice %7 {offsets = [192, 0], sizes = [32, 30], strides = [1, 1]} : vector<800x30xf32> to vector<32x30xf32>
    %c0_13 = arith.constant 0 : index
    %c180 = arith.constant 180 : index
    %21 = vector.load %arg14[%c0_13, %c180] : memref<32x750xf32, #tpu.memory_space<vmem>>, vector<32x30xf32>
    tpu.vector_store %arg14[%c0_13, %c180], %20 {strides = array<i32>} : memref<32x750xf32, #tpu.memory_space<vmem>>, vector<32x30xf32>,
    %22 = vector.extract_strided_slice %7 {offsets = [224, 0], sizes = [32, 30], strides = [1, 1]} : vector<800x30xf32> to vector<32x30xf32>
    %c0_14 = arith.constant 0 : index
    %c210 = arith.constant 210 : index
    %23 = vector.load %arg14[%c0_14, %c210] : memref<32x750xf32, #tpu.memory_space<vmem>>, vector<32x30xf32>
    tpu.vector_store %arg14[%c0_14, %c210], %22 {strides = array<i32>} : memref<32x750xf32, #tpu.memory_space<vmem>>, vector<32x30xf32>,
    %24 = vector.extract_strided_slice %7 {offsets = [256, 0], sizes = [32, 30], strides = [1, 1]} : vector<800x30xf32> to vector<32x30xf32>
    %c0_15 = arith.constant 0 : index
    %c240 = arith.constant 240 : index
    %25 = vector.load %arg14[%c0_15, %c240] : memref<32x750xf32, #tpu.memory_space<vmem>>, vector<32x30xf32>
    tpu.vector_store %arg14[%c0_15, %c240], %24 {strides = array<i32>} : memref<32x750xf32, #tpu.memory_space<vmem>>, vector<32x30xf32>,
    %26 = vector.extract_strided_slice %7 {offsets = [288, 0], sizes = [32, 30], strides = [1, 1]} : vector<800x30xf32> to vector<32x30xf32>
    %c0_16 = arith.constant 0 : index
    %c270 = arith.constant 270 : index
    %27 = vector.load %arg14[%c0_16, %c270] : memref<32x750xf32, #tpu.memory_space<vmem>>, vector<32x30xf32>
    tpu.vector_store %arg14[%c0_16, %c270], %26 {strides = array<i32>} : memref<32x750xf32, #tpu.memory_space<vmem>>, vector<32x30xf32>,
    %28 = vector.extract_strided_slice %7 {offsets = [320, 0], sizes = [32, 30], strides = [1, 1]} : vector<800x30xf32> to vector<32x30xf32>
    %c0_17 = arith.constant 0 : index
    %c300 = arith.constant 300 : index
    %29 = vector.load %arg14[%c0_17, %c300] : memref<32x750xf32, #tpu.memory_space<vmem>>, vector<32x30xf32>
    tpu.vector_store %arg14[%c0_17, %c300], %28 {strides = array<i32>} : memref<32x750xf32, #tpu.memory_space<vmem>>, vector<32x30xf32>,
    %30 = vector.extract_strided_slice %7 {offsets = [352, 0], sizes = [32, 30], strides = [1, 1]} : vector<800x30xf32> to vector<32x30xf32>
    %c0_18 = arith.constant 0 : index
    %c330 = arith.constant 330 : index
    %31 = vector.load %arg14[%c0_18, %c330] : memref<32x750xf32, #tpu.memory_space<vmem>>, vector<32x30xf32>
    tpu.vector_store %arg14[%c0_18, %c330], %30 {strides = array<i32>} : memref<32x750xf32, #tpu.memory_space<vmem>>, vector<32x30xf32>,
    %32 = vector.extract_strided_slice %7 {offsets = [384, 0], sizes = [32, 30], strides = [1, 1]} : vector<800x30xf32> to vector<32x30xf32>
    %c0_19 = arith.constant 0 : index
    %c360 = arith.constant 360 : index
    %33 = vector.load %arg14[%c0_19, %c360] : memref<32x750xf32, #tpu.memory_space<vmem>>, vector<32x30xf32>
    tpu.vector_store %arg14[%c0_19, %c360], %32 {strides = array<i32>} : memref<32x750xf32, #tpu.memory_space<vmem>>, vector<32x30xf32>,
    %34 = vector.extract_strided_slice %7 {offsets = [416, 0], sizes = [32, 30], strides = [1, 1]} : vector<800x30xf32> to vector<32x30xf32>
    %c0_20 = arith.constant 0 : index
    %c390 = arith.constant 390 : index
    %35 = vector.load %arg14[%c0_20, %c390] : memref<32x750xf32, #tpu.memory_space<vmem>>, vector<32x30xf32>
    tpu.vector_store %arg14[%c0_20, %c390], %34 {strides = array<i32>} : memref<32x750xf32, #tpu.memory_space<vmem>>, vector<32x30xf32>,
    %36 = vector.extract_strided_slice %7 {offsets = [448, 0], sizes = [32, 30], strides = [1, 1]} : vector<800x30xf32> to vector<32x30xf32>
    %c0_21 = arith.constant 0 : index
    %c420 = arith.constant 420 : index
    %37 = vector.load %arg14[%c0_21, %c420] : memref<32x750xf32, #tpu.memory_space<vmem>>, vector<32x30xf32>
    tpu.vector_store %arg14[%c0_21, %c420], %36 {strides = array<i32>} : memref<32x750xf32, #tpu.memory_space<vmem>>, vector<32x30xf32>,
    %38 = vector.extract_strided_slice %7 {offsets = [480, 0], sizes = [32, 30], strides = [1, 1]} : vector<800x30xf32> to vector<32x30xf32>
    %c0_22 = arith.constant 0 : index
    %c450 = arith.constant 450 : index
    %39 = vector.load %arg14[%c0_22, %c450] : memref<32x750xf32, #tpu.memory_space<vmem>>, vector<32x30xf32>
    tpu.vector_store %arg14[%c0_22, %c450], %38 {strides = array<i32>} : memref<32x750xf32, #tpu.memory_space<vmem>>, vector<32x30xf32>,
    %40 = vector.extract_strided_slice %7 {offsets = [512, 0], sizes = [32, 30], strides = [1, 1]} : vector<800x30xf32> to vector<32x30xf32>
    %c0_23 = arith.constant 0 : index
    %c480 = arith.constant 480 : index
    %41 = vector.load %arg14[%c0_23, %c480] : memref<32x750xf32, #tpu.memory_space<vmem>>, vector<32x30xf32>
    tpu.vector_store %arg14[%c0_23, %c480], %40 {strides = array<i32>} : memref<32x750xf32, #tpu.memory_space<vmem>>, vector<32x30xf32>,
    %42 = vector.extract_strided_slice %7 {offsets = [544, 0], sizes = [32, 30], strides = [1, 1]} : vector<800x30xf32> to vector<32x30xf32>
    %c0_24 = arith.constant 0 : index
    %c510 = arith.constant 510 : index
    %43 = vector.load %arg14[%c0_24, %c510] : memref<32x750xf32, #tpu.memory_space<vmem>>, vector<32x30xf32>
    tpu.vector_store %arg14[%c0_24, %c510], %42 {strides = array<i32>} : memref<32x750xf32, #tpu.memory_space<vmem>>, vector<32x30xf32>,
    %44 = vector.extract_strided_slice %7 {offsets = [576, 0], sizes = [32, 30], strides = [1, 1]} : vector<800x30xf32> to vector<32x30xf32>
    %c0_25 = arith.constant 0 : index
    %c540 = arith.constant 540 : index
    %45 = vector.load %arg14[%c0_25, %c540] : memref<32x750xf32, #tpu.memory_space<vmem>>, vector<32x30xf32>
    tpu.vector_store %arg14[%c0_25, %c540], %44 {strides = array<i32>} : memref<32x750xf32, #tpu.memory_space<vmem>>, vector<32x30xf32>,
    %46 = vector.extract_strided_slice %7 {offsets = [608, 0], sizes = [32, 30], strides = [1, 1]} : vector<800x30xf32> to vector<32x30xf32>
    %c0_26 = arith.constant 0 : index
    %c570 = arith.constant 570 : index
    %47 = vector.load %arg14[%c0_26, %c570] : memref<32x750xf32, #tpu.memory_space<vmem>>, vector<32x30xf32>
    tpu.vector_store %arg14[%c0_26, %c570], %46 {strides = array<i32>} : memref<32x750xf32, #tpu.memory_space<vmem>>, vector<32x30xf32>,
    %48 = vector.extract_strided_slice %7 {offsets = [640, 0], sizes = [32, 30], strides = [1, 1]} : vector<800x30xf32> to vector<32x30xf32>
    %c0_27 = arith.constant 0 : index
    %c600 = arith.constant 600 : index
    %49 = vector.load %arg14[%c0_27, %c600] : memref<32x750xf32, #tpu.memory_space<vmem>>, vector<32x30xf32>
    tpu.vector_store %arg14[%c0_27, %c600], %48 {strides = array<i32>} : memref<32x750xf32, #tpu.memory_space<vmem>>, vector<32x30xf32>,
    %50 = vector.extract_strided_slice %7 {offsets = [672, 0], sizes = [32, 30], strides = [1, 1]} : vector<800x30xf32> to vector<32x30xf32>
    %c0_28 = arith.constant 0 : index
    %c630 = arith.constant 630 : index
    %51 = vector.load %arg14[%c0_28, %c630] : memref<32x750xf32, #tpu.memory_space<vmem>>, vector<32x30xf32>
    tpu.vector_store %arg14[%c0_28, %c630], %50 {strides = array<i32>} : memref<32x750xf32, #tpu.memory_space<vmem>>, vector<32x30xf32>,
    %52 = vector.extract_strided_slice %7 {offsets = [704, 0], sizes = [32, 30], strides = [1, 1]} : vector<800x30xf32> to vector<32x30xf32>
    %c0_29 = arith.constant 0 : index
    %c660 = arith.constant 660 : index
    %53 = vector.load %arg14[%c0_29, %c660] : memref<32x750xf32, #tpu.memory_space<vmem>>, vector<32x30xf32>
    tpu.vector_store %arg14[%c0_29, %c660], %52 {strides = array<i32>} : memref<32x750xf32, #tpu.memory_space<vmem>>, vector<32x30xf32>,
    %54 = vector.extract_strided_slice %7 {offsets = [736, 0], sizes = [32, 30], strides = [1, 1]} : vector<800x30xf32> to vector<32x30xf32>
    %c0_30 = arith.constant 0 : index
    %c690 = arith.constant 690 : index
    %55 = vector.load %arg14[%c0_30, %c690] : memref<32x750xf32, #tpu.memory_space<vmem>>, vector<32x30xf32>
    tpu.vector_store %arg14[%c0_30, %c690], %54 {strides = array<i32>} : memref<32x750xf32, #tpu.memory_space<vmem>>, vector<32x30xf32>,
    %56 = vector.extract_strided_slice %7 {offsets = [768, 0], sizes = [32, 30], strides = [1, 1]} : vector<800x30xf32> to vector<32x30xf32>
    %c0_31 = arith.constant 0 : index
    %c720 = arith.constant 720 : index
    %57 = vector.load %arg14[%c0_31, %c720] : memref<32x750xf32, #tpu.memory_space<vmem>>, vector<32x30xf32>
    tpu.vector_store %arg14[%c0_31, %c720], %56 {strides = array<i32>} : memref<32x750xf32, #tpu.memory_space<vmem>>, vector<32x30xf32>,
    %c0_32 = arith.constant 0 : index
    %c0_33 = arith.constant 0 : index
    %58 = vector.load %arg14[%c0_32, %c0_33] : memref<32x750xf32, #tpu.memory_space<vmem>>, vector<32x750xf32>
    %c0_34 = arith.constant 0 : index
    %c0_35 = arith.constant 0 : index
    %59 = vector.load %arg3[%c0_34, %c0_35] : memref<750x60xf32, #tpu.memory_space<vmem>>, vector<750x60xf32>
    %cst_36 = arith.constant dense<0.000000e+00> : vector<32x60xf32>
    %60 = tpu.matmul %58, %59, %cst_36 {dimension_numbers = #tpu.dot_dimension_numbers<[1], [0], [0], [1], [0, 0, 1, 1], [], []>} : vector<32x750xf32>, vector<750x60xf32>, vector<32x60xf32> -> vector<32x60xf32>
    %c0_37 = arith.constant 0 : index
    %c0_38 = arith.constant 0 : index
    %61 = vector.load %arg4[%c0_37, %c0_38] : memref<1x60xf32, #tpu.memory_space<vmem>>, vector<1x60xf32>
    %62 = vector.broadcast %61 : vector<1x60xf32> to vector<32x60xf32>
    %63 = arith.addf %60, %62 : vector<32x60xf32>
    %cst_39 = arith.constant 0.000000e+00 : f32
    %64 = vector.broadcast %cst_39 : f32 to vector<32x60xf32>
    %65 = arith.maximumf %63, %64 : vector<32x60xf32>
    %66 = vector.extract_strided_slice %65 {offsets = [0, 0], sizes = [4, 60], strides = [1, 1]} : vector<32x60xf32> to vector<4x60xf32>
    %c0_40 = arith.constant 0 : index
    %c0_41 = arith.constant 0 : index
    %67 = vector.load %arg15[%c0_40, %c0_41] : memref<8x540xf32, #tpu.memory_space<vmem>>, vector<4x60xf32>
    tpu.vector_store %arg15[%c0_40, %c0_41], %66 {strides = array<i32>} : memref<8x540xf32, #tpu.memory_space<vmem>>, vector<4x60xf32>,
    %68 = vector.extract_strided_slice %65 {offsets = [8, 0], sizes = [4, 60], strides = [1, 1]} : vector<32x60xf32> to vector<4x60xf32>
    %c4 = arith.constant 4 : index
    %c0_42 = arith.constant 0 : index
    %69 = vector.load %arg15[%c4, %c0_42] : memref<8x540xf32, #tpu.memory_space<vmem>>, vector<4x60xf32>
    tpu.vector_store %arg15[%c4, %c0_42], %68 {strides = array<i32>} : memref<8x540xf32, #tpu.memory_space<vmem>>, vector<4x60xf32>,
    %70 = vector.extract_strided_slice %65 {offsets = [2, 0], sizes = [4, 60], strides = [1, 1]} : vector<32x60xf32> to vector<4x60xf32>
    %c0_43 = arith.constant 0 : index
    %c60_44 = arith.constant 60 : index
    %71 = vector.load %arg15[%c0_43, %c60_44] : memref<8x540xf32, #tpu.memory_space<vmem>>, vector<4x60xf32>
    tpu.vector_store %arg15[%c0_43, %c60_44], %70 {strides = array<i32>} : memref<8x540xf32, #tpu.memory_space<vmem>>, vector<4x60xf32>,
    %72 = vector.extract_strided_slice %65 {offsets = [10, 0], sizes = [4, 60], strides = [1, 1]} : vector<32x60xf32> to vector<4x60xf32>
    %c4_45 = arith.constant 4 : index
    %c60_46 = arith.constant 60 : index
    %73 = vector.load %arg15[%c4_45, %c60_46] : memref<8x540xf32, #tpu.memory_space<vmem>>, vector<4x60xf32>
    tpu.vector_store %arg15[%c4_45, %c60_46], %72 {strides = array<i32>} : memref<8x540xf32, #tpu.memory_space<vmem>>, vector<4x60xf32>,
    %74 = vector.extract_strided_slice %65 {offsets = [4, 0], sizes = [4, 60], strides = [1, 1]} : vector<32x60xf32> to vector<4x60xf32>
    %c0_47 = arith.constant 0 : index
    %c120_48 = arith.constant 120 : index
    %75 = vector.load %arg15[%c0_47, %c120_48] : memref<8x540xf32, #tpu.memory_space<vmem>>, vector<4x60xf32>
    tpu.vector_store %arg15[%c0_47, %c120_48], %74 {strides = array<i32>} : memref<8x540xf32, #tpu.memory_space<vmem>>, vector<4x60xf32>,
    %76 = vector.extract_strided_slice %65 {offsets = [12, 0], sizes = [4, 60], strides = [1, 1]} : vector<32x60xf32> to vector<4x60xf32>
    %c4_49 = arith.constant 4 : index
    %c120_50 = arith.constant 120 : index
    %77 = vector.load %arg15[%c4_49, %c120_50] : memref<8x540xf32, #tpu.memory_space<vmem>>, vector<4x60xf32>
    tpu.vector_store %arg15[%c4_49, %c120_50], %76 {strides = array<i32>} : memref<8x540xf32, #tpu.memory_space<vmem>>, vector<4x60xf32>,
    %78 = vector.extract_strided_slice %65 {offsets = [8, 0], sizes = [4, 60], strides = [1, 1]} : vector<32x60xf32> to vector<4x60xf32>
    %c0_51 = arith.constant 0 : index
    %c180_52 = arith.constant 180 : index
    %79 = vector.load %arg15[%c0_51, %c180_52] : memref<8x540xf32, #tpu.memory_space<vmem>>, vector<4x60xf32>
    tpu.vector_store %arg15[%c0_51, %c180_52], %78 {strides = array<i32>} : memref<8x540xf32, #tpu.memory_space<vmem>>, vector<4x60xf32>,
    %80 = vector.extract_strided_slice %65 {offsets = [16, 0], sizes = [4, 60], strides = [1, 1]} : vector<32x60xf32> to vector<4x60xf32>
    %c4_53 = arith.constant 4 : index
    %c180_54 = arith.constant 180 : index
    %81 = vector.load %arg15[%c4_53, %c180_54] : memref<8x540xf32, #tpu.memory_space<vmem>>, vector<4x60xf32>
    tpu.vector_store %arg15[%c4_53, %c180_54], %80 {strides = array<i32>} : memref<8x540xf32, #tpu.memory_space<vmem>>, vector<4x60xf32>,
    %82 = vector.extract_strided_slice %65 {offsets = [10, 0], sizes = [4, 60], strides = [1, 1]} : vector<32x60xf32> to vector<4x60xf32>
    %c0_55 = arith.constant 0 : index
    %c240_56 = arith.constant 240 : index
    %83 = vector.load %arg15[%c0_55, %c240_56] : memref<8x540xf32, #tpu.memory_space<vmem>>, vector<4x60xf32>
    tpu.vector_store %arg15[%c0_55, %c240_56], %82 {strides = array<i32>} : memref<8x540xf32, #tpu.memory_space<vmem>>, vector<4x60xf32>,
    %84 = vector.extract_strided_slice %65 {offsets = [18, 0], sizes = [4, 60], strides = [1, 1]} : vector<32x60xf32> to vector<4x60xf32>
    %c4_57 = arith.constant 4 : index
    %c240_58 = arith.constant 240 : index
    %85 = vector.load %arg15[%c4_57, %c240_58] : memref<8x540xf32, #tpu.memory_space<vmem>>, vector<4x60xf32>
    tpu.vector_store %arg15[%c4_57, %c240_58], %84 {strides = array<i32>} : memref<8x540xf32, #tpu.memory_space<vmem>>, vector<4x60xf32>,
    %86 = vector.extract_strided_slice %65 {offsets = [12, 0], sizes = [4, 60], strides = [1, 1]} : vector<32x60xf32> to vector<4x60xf32>
    %c0_59 = arith.constant 0 : index
    %c300_60 = arith.constant 300 : index
    %87 = vector.load %arg15[%c0_59, %c300_60] : memref<8x540xf32, #tpu.memory_space<vmem>>, vector<4x60xf32>
    tpu.vector_store %arg15[%c0_59, %c300_60], %86 {strides = array<i32>} : memref<8x540xf32, #tpu.memory_space<vmem>>, vector<4x60xf32>,
    %88 = vector.extract_strided_slice %65 {offsets = [20, 0], sizes = [4, 60], strides = [1, 1]} : vector<32x60xf32> to vector<4x60xf32>
    %c4_61 = arith.constant 4 : index
    %c300_62 = arith.constant 300 : index
    %89 = vector.load %arg15[%c4_61, %c300_62] : memref<8x540xf32, #tpu.memory_space<vmem>>, vector<4x60xf32>
    tpu.vector_store %arg15[%c4_61, %c300_62], %88 {strides = array<i32>} : memref<8x540xf32, #tpu.memory_space<vmem>>, vector<4x60xf32>,
    %90 = vector.extract_strided_slice %65 {offsets = [16, 0], sizes = [4, 60], strides = [1, 1]} : vector<32x60xf32> to vector<4x60xf32>
    %c0_63 = arith.constant 0 : index
    %c360_64 = arith.constant 360 : index
    %91 = vector.load %arg15[%c0_63, %c360_64] : memref<8x540xf32, #tpu.memory_space<vmem>>, vector<4x60xf32>
    tpu.vector_store %arg15[%c0_63, %c360_64], %90 {strides = array<i32>} : memref<8x540xf32, #tpu.memory_space<vmem>>, vector<4x60xf32>,
    %92 = vector.extract_strided_slice %65 {offsets = [24, 0], sizes = [4, 60], strides = [1, 1]} : vector<32x60xf32> to vector<4x60xf32>
    %c4_65 = arith.constant 4 : index
    %c360_66 = arith.constant 360 : index
    %93 = vector.load %arg15[%c4_65, %c360_66] : memref<8x540xf32, #tpu.memory_space<vmem>>, vector<4x60xf32>
    tpu.vector_store %arg15[%c4_65, %c360_66], %92 {strides = array<i32>} : memref<8x540xf32, #tpu.memory_space<vmem>>, vector<4x60xf32>,
    %94 = vector.extract_strided_slice %65 {offsets = [18, 0], sizes = [4, 60], strides = [1, 1]} : vector<32x60xf32> to vector<4x60xf32>
    %c0_67 = arith.constant 0 : index
    %c420_68 = arith.constant 420 : index
    %95 = vector.load %arg15[%c0_67, %c420_68] : memref<8x540xf32, #tpu.memory_space<vmem>>, vector<4x60xf32>
    tpu.vector_store %arg15[%c0_67, %c420_68], %94 {strides = array<i32>} : memref<8x540xf32, #tpu.memory_space<vmem>>, vector<4x60xf32>,
    %96 = vector.extract_strided_slice %65 {offsets = [26, 0], sizes = [4, 60], strides = [1, 1]} : vector<32x60xf32> to vector<4x60xf32>
    %c4_69 = arith.constant 4 : index
    %c420_70 = arith.constant 420 : index
    %97 = vector.load %arg15[%c4_69, %c420_70] : memref<8x540xf32, #tpu.memory_space<vmem>>, vector<4x60xf32>
    tpu.vector_store %arg15[%c4_69, %c420_70], %96 {strides = array<i32>} : memref<8x540xf32, #tpu.memory_space<vmem>>, vector<4x60xf32>,
    %98 = vector.extract_strided_slice %65 {offsets = [20, 0], sizes = [4, 60], strides = [1, 1]} : vector<32x60xf32> to vector<4x60xf32>
    %c0_71 = arith.constant 0 : index
    %c480_72 = arith.constant 480 : index
    %99 = vector.load %arg15[%c0_71, %c480_72] : memref<8x540xf32, #tpu.memory_space<vmem>>, vector<4x60xf32>
    tpu.vector_store %arg15[%c0_71, %c480_72], %98 {strides = array<i32>} : memref<8x540xf32, #tpu.memory_space<vmem>>, vector<4x60xf32>,
    %100 = vector.extract_strided_slice %65 {offsets = [28, 0], sizes = [4, 60], strides = [1, 1]} : vector<32x60xf32> to vector<4x60xf32>
    %c4_73 = arith.constant 4 : index
    %c480_74 = arith.constant 480 : index
    %101 = vector.load %arg15[%c4_73, %c480_74] : memref<8x540xf32, #tpu.memory_space<vmem>>, vector<4x60xf32>
    tpu.vector_store %arg15[%c4_73, %c480_74], %100 {strides = array<i32>} : memref<8x540xf32, #tpu.memory_space<vmem>>, vector<4x60xf32>,
    %c0_75 = arith.constant 0 : index
    %c0_76 = arith.constant 0 : index
    %102 = vector.load %arg15[%c0_75, %c0_76] : memref<8x540xf32, #tpu.memory_space<vmem>>, vector<8x540xf32>
    %c0_77 = arith.constant 0 : index
    %c0_78 = arith.constant 0 : index
    %103 = vector.load %arg5[%c0_77, %c0_78] : memref<540x60xf32, #tpu.memory_space<vmem>>, vector<540x60xf32>
    %cst_79 = arith.constant dense<0.000000e+00> : vector<8x60xf32>
    %104 = tpu.matmul %102, %103, %cst_79 {dimension_numbers = #tpu.dot_dimension_numbers<[1], [0], [0], [1], [0, 0, 1, 1], [], []>} : vector<8x540xf32>, vector<540x60xf32>, vector<8x60xf32> -> vector<8x60xf32>
    %c0_80 = arith.constant 0 : index
    %c0_81 = arith.constant 0 : index
    %105 = vector.load %arg6[%c0_80, %c0_81] : memref<1x60xf32, #tpu.memory_space<vmem>>, vector<1x60xf32>
    %106 = vector.broadcast %105 : vector<1x60xf32> to vector<8x60xf32>
    %107 = arith.addf %104, %106 : vector<8x60xf32>
    %cst_82 = arith.constant 0.000000e+00 : f32
    %108 = vector.broadcast %cst_82 : f32 to vector<8x60xf32>
    %109 = arith.maximumf %107, %108 : vector<8x60xf32>
    %110 = vector.extract_strided_slice %109 {offsets = [0, 0], sizes = [2, 60], strides = [1, 1]} : vector<8x60xf32> to vector<2x60xf32>
    %c0_83 = arith.constant 0 : index
    %c0_84 = arith.constant 0 : index
    %111 = vector.load %arg16[%c0_83, %c0_84] : memref<2x240xf32, #tpu.memory_space<vmem>>, vector<2x60xf32>
    tpu.vector_store %arg16[%c0_83, %c0_84], %110 {strides = array<i32>} : memref<2x240xf32, #tpu.memory_space<vmem>>, vector<2x60xf32>,
    %112 = vector.extract_strided_slice %109 {offsets = [2, 0], sizes = [2, 60], strides = [1, 1]} : vector<8x60xf32> to vector<2x60xf32>
    %c0_85 = arith.constant 0 : index
    %c60_86 = arith.constant 60 : index
    %113 = vector.load %arg16[%c0_85, %c60_86] : memref<2x240xf32, #tpu.memory_space<vmem>>, vector<2x60xf32>
    tpu.vector_store %arg16[%c0_85, %c60_86], %112 {strides = array<i32>} : memref<2x240xf32, #tpu.memory_space<vmem>>, vector<2x60xf32>,
    %114 = vector.extract_strided_slice %109 {offsets = [4, 0], sizes = [2, 60], strides = [1, 1]} : vector<8x60xf32> to vector<2x60xf32>
    %c0_87 = arith.constant 0 : index
    %c120_88 = arith.constant 120 : index
    %115 = vector.load %arg16[%c0_87, %c120_88] : memref<2x240xf32, #tpu.memory_space<vmem>>, vector<2x60xf32>
    tpu.vector_store %arg16[%c0_87, %c120_88], %114 {strides = array<i32>} : memref<2x240xf32, #tpu.memory_space<vmem>>, vector<2x60xf32>,
    %116 = vector.extract_strided_slice %109 {offsets = [6, 0], sizes = [2, 60], strides = [1, 1]} : vector<8x60xf32> to vector<2x60xf32>
    %c0_89 = arith.constant 0 : index
    %c180_90 = arith.constant 180 : index
    %117 = vector.load %arg16[%c0_89, %c180_90] : memref<2x240xf32, #tpu.memory_space<vmem>>, vector<2x60xf32>
    tpu.vector_store %arg16[%c0_89, %c180_90], %116 {strides = array<i32>} : memref<2x240xf32, #tpu.memory_space<vmem>>, vector<2x60xf32>,
    %c0_91 = arith.constant 0 : index
    %c0_92 = arith.constant 0 : index
    %118 = vector.load %arg16[%c0_91, %c0_92] : memref<2x240xf32, #tpu.memory_space<vmem>>, vector<2x240xf32>
    %c0_93 = arith.constant 0 : index
    %c0_94 = arith.constant 0 : index
    %119 = vector.load %arg7[%c0_93, %c0_94] : memref<240x64xf32, #tpu.memory_space<vmem>>, vector<240x64xf32>
    %cst_95 = arith.constant dense<0.000000e+00> : vector<2x64xf32>
    %120 = tpu.matmul %118, %119, %cst_95 {dimension_numbers = #tpu.dot_dimension_numbers<[1], [0], [0], [1], [0, 0, 1, 1], [], []>} : vector<2x240xf32>, vector<240x64xf32>, vector<2x64xf32> -> vector<2x64xf32>
    %c0_96 = arith.constant 0 : index
    %c0_97 = arith.constant 0 : index
    %121 = vector.load %arg8[%c0_96, %c0_97] : memref<1x64xf32, #tpu.memory_space<vmem>>, vector<1x64xf32>
    %122 = vector.broadcast %121 : vector<1x64xf32> to vector<2x64xf32>
    %123 = arith.addf %120, %122 : vector<2x64xf32>
    %cst_98 = arith.constant 0.000000e+00 : f32
    %124 = vector.broadcast %cst_98 : f32 to vector<2x64xf32>
    %125 = arith.maximumf %123, %124 : vector<2x64xf32>
    %c0_99 = arith.constant 0 : index
    %c0_100 = arith.constant 0 : index
    %126 = vector.load %arg9[%c0_99, %c0_100] : memref<64x64xf32, #tpu.memory_space<vmem>>, vector<64x64xf32>
    %cst_101 = arith.constant dense<0.000000e+00> : vector<2x64xf32>
    %127 = tpu.matmul %125, %126, %cst_101 {dimension_numbers = #tpu.dot_dimension_numbers<[1], [0], [0], [1], [0, 0, 1, 1], [], []>} : vector<2x64xf32>, vector<64x64xf32>, vector<2x64xf32> -> vector<2x64xf32>
    %c0_102 = arith.constant 0 : index
    %c0_103 = arith.constant 0 : index
    %128 = vector.load %arg10[%c0_102, %c0_103] : memref<1x64xf32, #tpu.memory_space<vmem>>, vector<1x64xf32>
    %129 = vector.broadcast %128 : vector<1x64xf32> to vector<2x64xf32>
    %130 = arith.addf %127, %129 : vector<2x64xf32>
    %cst_104 = arith.constant 0.000000e+00 : f32
    %131 = vector.broadcast %cst_104 : f32 to vector<2x64xf32>
    %132 = arith.maximumf %130, %131 : vector<2x64xf32>
    %c0_105 = arith.constant 0 : index
    %c0_106 = arith.constant 0 : index
    %133 = vector.load %arg11[%c0_105, %c0_106] : memref<64x128xf32, #tpu.memory_space<vmem>>, vector<64x128xf32>
    %cst_107 = arith.constant dense<0.000000e+00> : vector<2x128xf32>
    %134 = tpu.matmul %132, %133, %cst_107 {dimension_numbers = #tpu.dot_dimension_numbers<[1], [0], [0], [1], [0, 0, 1, 1], [], []>} : vector<2x64xf32>, vector<64x128xf32>, vector<2x128xf32> -> vector<2x128xf32>
    %c0_108 = arith.constant 0 : index
    %c0_109 = arith.constant 0 : index
    %135 = vector.load %arg12[%c0_108, %c0_109] : memref<1x128xf32, #tpu.memory_space<vmem>>, vector<1x128xf32>
    %136 = vector.broadcast %135 : vector<1x128xf32> to vector<2x128xf32>
    %137 = arith.addf %134, %136 : vector<2x128xf32>
    %c0_110 = arith.constant 0 : index
    %c0_111 = arith.constant 0 : index
    %138 = vector.load %arg13[%c0_110, %c0_111] : memref<2x128xf32, #tpu.memory_space<vmem>>, vector<2x128xf32>
    tpu.vector_store %arg13[%c0_110, %c0_111], %137 {strides = array<i32>} : memref<2x128xf32, #tpu.memory_space<vmem>>, vector<2x128xf32>,
    return
  }
}

</mosaic_0001>

<llo_original>
// kernel: forward.1
$region0: #{forward.1}
  #allocation0 [shape = 'u32[]', space=smem, size = 0x4, offset = 0x4, fixed_abs, tag = 'smem constant byte address 0x4 - core index']
  #allocation1 [shape = 'u32[72,128]{1,0:T(1,128)}', space=vmem, size = 0x9000, scoped, tag = 'internal scratch']
  #allocation2 [shape = 'f32[32,750]{1,0:T(8,128)}', space=vmem, size = 0x18000, scoped, tag = 'scratch operand']
  #allocation3 [shape = 'f32[8,540]{1,0:T(8,128)}', space=vmem, size = 0x5000, scoped, tag = 'scratch operand']
  #allocation4 [shape = 'f32[2,240]{1,0:T(2,128)}', space=vmem, size = 0x800, scoped, tag = 'scratch operand']
  %s0 = inlined_call_operand.vmem [shape: f32[800,75], index: 0, kind: input, shape index: {}]
  %s1 = inlined_call_operand.vmem [shape: f32[75,30], index: 1, kind: input, shape index: {}]
  %s2 = inlined_call_operand.vmem [shape: f32[1,30], index: 2, kind: input, shape index: {}]
  %s3 = inlined_call_operand.vmem [shape: f32[750,60], index: 3, kind: input, shape index: {}]
  %s4 = inlined_call_operand.vmem [shape: f32[1,60], index: 4, kind: input, shape index: {}]
  %s5 = inlined_call_operand.vmem [shape: f32[540,60], index: 5, kind: input, shape index: {}]
  %s6 = inlined_call_operand.vmem [shape: f32[1,60], index: 6, kind: input, shape index: {}]
  %s7 = inlined_call_operand.vmem [shape: f32[240,64], index: 7, kind: input, shape index: {}]
  %s8 = inlined_call_operand.vmem [shape: f32[1,64], index: 8, kind: input, shape index: {}]
  %s9 = inlined_call_operand.vmem [shape: f32[64,64], index: 9, kind: input, shape index: {}]
  %s10 = inlined_call_operand.vmem [shape: f32[1,64], index: 10, kind: input, shape index: {}]
  %s11 = inlined_call_operand.vmem [shape: f32[64,128], index: 11, kind: input, shape index: {}]
  %s12 = inlined_call_operand.vmem [shape: f32[1,128], index: 12, kind: input, shape index: {}]
  %s13 = inlined_call_operand.vmem [shape: f32[2,128], index: 13, kind: output, shape index: {}]
  %s14 = sld [smem:[#allocation0]]
  $region62: #{forward.1} parent=0
    _
  %s16 = ssub.s32 1, %s14
  %s17 = scalar_select 0, %s16, %s14
  // Predicated region
  $region2: #{forward.1} parent=0 // pred_check
    _
  $region3: #{forward.1} parent=0 // pred_check_branch
    %19 = sbr.rel (0) target = $region5
  $region4: #{forward.1} parent=0 // pred_region
    _
  $region5: #{forward.1} parent=0 // pred_fallthru
    _
  // Predicated region
  $region6: #{forward.1} parent=0 // pred_check
    _
  $region7: #{forward.1} parent=0 // pred_check_branch
    %21 = sbr.rel (0) target = $region9
  $region8: #{forward.1} parent=0 // pred_region
    _
  $region9: #{forward.1} parent=0 // pred_fallthru
    _
  // Predicated region
  $region10: #{forward.1} parent=0 // pred_check
    _
  $region11: #{forward.1} parent=0 // pred_check_branch
    %23 = sbr.rel (0) target = $region13
  $region12: #{forward.1} parent=0 // pred_region
    _
  $region13: #{forward.1} parent=0 // pred_fallthru
    _
  // Predicated region
  $region14: #{forward.1} parent=0 // pred_check
    _
  $region15: #{forward.1} parent=0 // pred_check_branch
    %25 = sbr.rel (0) target = $region17
  $region16: #{forward.1} parent=0 // pred_region
    _
  $region17: #{forward.1} parent=0 // pred_fallthru
    _
  // Predicated region
  $region18: #{forward.1} parent=0 // pred_check
    _
  $region19: #{forward.1} parent=0 // pred_check_branch
    %27 = sbr.rel (0) target = $region21
  $region20: #{forward.1} parent=0 // pred_region
    _
  $region21: #{forward.1} parent=0 // pred_fallthru
    _
  // Predicated region
  $region22: #{forward.1} parent=0 // pred_check
    _
  $region23: #{forward.1} parent=0 // pred_check_branch
    %29 = sbr.rel (0) target = $region25
  $region24: #{forward.1} parent=0 // pred_region
    _
  $region25: #{forward.1} parent=0 // pred_fallthru
    _
  // Predicated region
  $region26: #{forward.1} parent=0 // pred_check
    _
  $region27: #{forward.1} parent=0 // pred_check_branch
    %31 = sbr.rel (0) target = $region29
  $region28: #{forward.1} parent=0 // pred_region
    _
  $region29: #{forward.1} parent=0 // pred_fallthru
    _
  // Predicated region
  $region30: #{forward.1} parent=0 // pred_check
    _
  $region31: #{forward.1} parent=0 // pred_check_branch
    %33 = sbr.rel (0) target = $region33
  $region32: #{forward.1} parent=0 // pred_region
    _
  $region33: #{forward.1} parent=0 // pred_fallthru
    _
  // Predicated region
  $region34: #{forward.1} parent=0 // pred_check
    _
  $region35: #{forward.1} parent=0 // pred_check_branch
    %35 = sbr.rel (0) target = $region37
  $region36: #{forward.1} parent=0 // pred_region
    _
  $region37: #{forward.1} parent=0 // pred_fallthru
    _
  // Predicated region
  $region38: #{forward.1} parent=0 // pred_check
    _
  $region39: #{forward.1} parent=0 // pred_check_branch
    %37 = sbr.rel (0) target = $region41
  $region40: #{forward.1} parent=0 // pred_region
    _
  $region41: #{forward.1} parent=0 // pred_fallthru
    _
  // Predicated region
  $region42: #{forward.1} parent=0 // pred_check
    _
  $region43: #{forward.1} parent=0 // pred_check_branch
    %39 = sbr.rel (0) target = $region45
  $region44: #{forward.1} parent=0 // pred_region
    _
  $region45: #{forward.1} parent=0 // pred_fallthru
    _
  // Predicated region
  $region46: #{forward.1} parent=0 // pred_check
    _
  $region47: #{forward.1} parent=0 // pred_check_branch
    %41 = sbr.rel (0) target = $region49
  $region48: #{forward.1} parent=0 // pred_region
    _
  $region49: #{forward.1} parent=0 // pred_fallthru
    _
  // Predicated region
  $region50: #{forward.1} parent=0 // pred_check
    _
  $region51: #{forward.1} parent=0 // pred_check_branch
    %43 = sbr.rel (0) target = $region53
  $region52: #{forward.1} parent=0 // pred_region
    _
  $region53: #{forward.1} parent=0 // pred_fallthru
    _
  %v44 = vld [vmem:[%s0] sm:$0xff]
  %v45 = vld [vmem:[%s0 + $0x8] sm:$0xff]
  %v46 = vld [vmem:[%s0 + $0x10] sm:$0xff]
  %v47 = vld [vmem:[%s0 + $0x18] sm:$0xff]
  %v48 = vld [vmem:[%s0 + $0x20] sm:$0xff]
  %v49 = vld [vmem:[%s0 + $0x28] sm:$0xff]
  %v50 = vld [vmem:[%s0 + $0x30] sm:$0xff]
  %v51 = vld [vmem:[%s0 + $0x38] sm:$0xff]
  %v52 = vld [vmem:[%s0 + $0x40] sm:$0xff]
  %v53 = vld [vmem:[%s0 + $0x48] sm:$0xff]
  %v54 = vld [vmem:[%s0 + $0x50] sm:$0xff]
  %v55 = vld [vmem:[%s0 + $0x58] sm:$0xff]
  %v56 = vld [vmem:[%s0 + $0x60] sm:$0xff]
  %v57 = vld [vmem:[%s0 + $0x68] sm:$0xff]
  %v58 = vld [vmem:[%s0 + $0x70] sm:$0xff]
  %v59 = vld [vmem:[%s0 + $0x78] sm:$0xff]
  %v60 = vld [vmem:[%s0 + $0x80] sm:$0xff]
  %v61 = vld [vmem:[%s0 + $0x88] sm:$0xff]
  %v62 = vld [vmem:[%s0 + $0x90] sm:$0xff]
  %v63 = vld [vmem:[%s0 + $0x98] sm:$0xff]
  %v64 = vld [vmem:[%s0 + $0xa0] sm:$0xff]
  %v65 = vld [vmem:[%s0 + $0xa8] sm:$0xff]
  %v66 = vld [vmem:[%s0 + $0xb0] sm:$0xff]
  %v67 = vld [vmem:[%s0 + $0xb8] sm:$0xff]
  %v68 = vld [vmem:[%s0 + $0xc0] sm:$0xff]
  %v69 = vld [vmem:[%s0 + $0xc8] sm:$0xff]
  %v70 = vld [vmem:[%s0 + $0xd0] sm:$0xff]
  %v71 = vld [vmem:[%s0 + $0xd8] sm:$0xff]
  %v72 = vld [vmem:[%s0 + $0xe0] sm:$0xff]
  %v73 = vld [vmem:[%s0 + $0xe8] sm:$0xff]
  %v74 = vld [vmem:[%s0 + $0xf0] sm:$0xff]
  %v75 = vld [vmem:[%s0 + $0xf8] sm:$0xff]
  %v76 = vld [vmem:[%s0 + $0x100] sm:$0xff]
  %v77 = vld [vmem:[%s0 + $0x108] sm:$0xff]
  %v78 = vld [vmem:[%s0 + $0x110] sm:$0xff]
  %v79 = vld [vmem:[%s0 + $0x118] sm:$0xff]
  %v80 = vld [vmem:[%s0 + $0x120] sm:$0xff]
  %v81 = vld [vmem:[%s0 + $0x128] sm:$0xff]
  %v82 = vld [vmem:[%s0 + $0x130] sm:$0xff]
  %v83 = vld [vmem:[%s0 + $0x138] sm:$0xff]
  %v84 = vld [vmem:[%s0 + $0x140] sm:$0xff]
  %v85 = vld [vmem:[%s0 + $0x148] sm:$0xff]
  %v86 = vld [vmem:[%s0 + $0x150] sm:$0xff]
  %v87 = vld [vmem:[%s0 + $0x158] sm:$0xff]
  %v88 = vld [vmem:[%s0 + $0x160] sm:$0xff]
  %v89 = vld [vmem:[%s0 + $0x168] sm:$0xff]
  %v90 = vld [vmem:[%s0 + $0x170] sm:$0xff]
  %v91 = vld [vmem:[%s0 + $0x178] sm:$0xff]
  %v92 = vld [vmem:[%s0 + $0x180] sm:$0xff]
  %v93 = vld [vmem:[%s0 + $0x188] sm:$0xff]
  %v94 = vld [vmem:[%s0 + $0x190] sm:$0xff]
  %v95 = vld [vmem:[%s0 + $0x198] sm:$0xff]
  %v96 = vld [vmem:[%s0 + $0x1a0] sm:$0xff]
  %v97 = vld [vmem:[%s0 + $0x1a8] sm:$0xff]
  %v98 = vld [vmem:[%s0 + $0x1b0] sm:$0xff]
  %v99 = vld [vmem:[%s0 + $0x1b8] sm:$0xff]
  %v100 = vld [vmem:[%s0 + $0x1c0] sm:$0xff]
  %v101 = vld [vmem:[%s0 + $0x1c8] sm:$0xff]
  %v102 = vld [vmem:[%s0 + $0x1d0] sm:$0xff]
  %v103 = vld [vmem:[%s0 + $0x1d8] sm:$0xff]
  %v104 = vld [vmem:[%s0 + $0x1e0] sm:$0xff]
  %v105 = vld [vmem:[%s0 + $0x1e8] sm:$0xff]
  %v106 = vld [vmem:[%s0 + $0x1f0] sm:$0xff]
  %v107 = vld [vmem:[%s0 + $0x1f8] sm:$0xff]
  %v108 = vld [vmem:[%s0 + $0x200] sm:$0xff]
  %v109 = vld [vmem:[%s0 + $0x208] sm:$0xff]
  %v110 = vld [vmem:[%s0 + $0x210] sm:$0xff]
  %v111 = vld [vmem:[%s0 + $0x218] sm:$0xff]
  %v112 = vld [vmem:[%s0 + $0x220] sm:$0xff]
  %v113 = vld [vmem:[%s0 + $0x228] sm:$0xff]
  %v114 = vld [vmem:[%s0 + $0x230] sm:$0xff]
  %v115 = vld [vmem:[%s0 + $0x238] sm:$0xff]
  %v116 = vld [vmem:[%s0 + $0x240] sm:$0xff]
  %v117 = vld [vmem:[%s0 + $0x248] sm:$0xff]
  %v118 = vld [vmem:[%s0 + $0x250] sm:$0xff]
  %v119 = vld [vmem:[%s0 + $0x258] sm:$0xff]
  %v120 = vld [vmem:[%s0 + $0x260] sm:$0xff]
  %v121 = vld [vmem:[%s0 + $0x268] sm:$0xff]
  %v122 = vld [vmem:[%s0 + $0x270] sm:$0xff]
  %v123 = vld [vmem:[%s0 + $0x278] sm:$0xff]
  %v124 = vld [vmem:[%s0 + $0x280] sm:$0xff]
  %v125 = vld [vmem:[%s0 + $0x288] sm:$0xff]
  %v126 = vld [vmem:[%s0 + $0x290] sm:$0xff]
  %v127 = vld [vmem:[%s0 + $0x298] sm:$0xff]
  %v128 = vld [vmem:[%s0 + $0x2a0] sm:$0xff]
  %v129 = vld [vmem:[%s0 + $0x2a8] sm:$0xff]
  %v130 = vld [vmem:[%s0 + $0x2b0] sm:$0xff]
  %v131 = vld [vmem:[%s0 + $0x2b8] sm:$0xff]
  %v132 = vld [vmem:[%s0 + $0x2c0] sm:$0xff]
  %v133 = vld [vmem:[%s0 + $0x2c8] sm:$0xff]
  %v134 = vld [vmem:[%s0 + $0x2d0] sm:$0xff]
  %v135 = vld [vmem:[%s0 + $0x2d8] sm:$0xff]
  %v136 = vld [vmem:[%s0 + $0x2e0] sm:$0xff]
  %v137 = vld [vmem:[%s0 + $0x2e8] sm:$0xff]
  %v138 = vld [vmem:[%s0 + $0x2f0] sm:$0xff]
  %v139 = vld [vmem:[%s0 + $0x2f8] sm:$0xff]
  %v140 = vld [vmem:[%s0 + $0x300] sm:$0xff]
  %v141 = vld [vmem:[%s0 + $0x308] sm:$0xff]
  %v142 = vld [vmem:[%s0 + $0x310] sm:$0xff]
  %v143 = vld [vmem:[%s0 + $0x318] sm:$0xff]
  %v144 = vld [vmem:[%s1] sm:$0xff]
  %v145 = vld [vmem:[%s1 + $0x8] sm:$0xff]
  %v146 = vld [vmem:[%s1 + $0x10] sm:$0xff]
  %v147 = vld [vmem:[%s1 + $0x18] sm:$0xff]
  %v148 = vld [vmem:[%s1 + $0x20] sm:$0xff]
  %v149 = vld [vmem:[%s1 + $0x28] sm:$0xff]
  %v150 = vld [vmem:[%s1 + $0x30] sm:$0xff]
  %v151 = vld [vmem:[%s1 + $0x38] sm:$0xff]
  %v152 = vld [vmem:[%s1 + $0x40] sm:$0xff]
  %v153 = vld [vmem:[%s1 + $0x48] sm:$0x7]
  %v154 = vld [vmem:[%s2] sm:$0x1]
  %v156 = vperm.slane %v154, 0
  %vm158 = vcmask 613376
  %v160 = vsel %vm158, %v44, 0
  %v163 = vsel %vm158, %v45, 0
  %v166 = vsel %vm158, %v46, 0
  %v169 = vsel %vm158, %v47, 0
  %v172 = vsel %vm158, %v48, 0
  %v175 = vsel %vm158, %v49, 0
  %v178 = vsel %vm158, %v50, 0
  %v181 = vsel %vm158, %v51, 0
  %v184 = vsel %vm158, %v52, 0
  %v187 = vsel %vm158, %v53, 0
  %v190 = vsel %vm158, %v54, 0
  %v193 = vsel %vm158, %v55, 0
  %v196 = vsel %vm158, %v56, 0
  %v199 = vsel %vm158, %v57, 0
  %v202 = vsel %vm158, %v58, 0
  %v205 = vsel %vm158, %v59, 0
  %v208 = vsel %vm158, %v60, 0
  %v211 = vsel %vm158, %v61, 0
  %v214 = vsel %vm158, %v62, 0
  %v217 = vsel %vm158, %v63, 0
  %v220 = vsel %vm158, %v64, 0
  %v223 = vsel %vm158, %v65, 0
  %v226 = vsel %vm158, %v66, 0
  %v229 = vsel %vm158, %v67, 0
  %v232 = vsel %vm158, %v68, 0
  %v235 = vsel %vm158, %v69, 0
  %v238 = vsel %vm158, %v70, 0
  %v241 = vsel %vm158, %v71, 0
  %v244 = vsel %vm158, %v72, 0
  %v247 = vsel %vm158, %v73, 0
  %v250 = vsel %vm158, %v74, 0
  %v253 = vsel %vm158, %v75, 0
  %v256 = vsel %vm158, %v76, 0
  %v259 = vsel %vm158, %v77, 0
  %v262 = vsel %vm158, %v78, 0
  %v265 = vsel %vm158, %v79, 0
  %v268 = vsel %vm158, %v80, 0
  %v271 = vsel %vm158, %v81, 0
  %v274 = vsel %vm158, %v82, 0
  %v277 = vsel %vm158, %v83, 0
  %v280 = vsel %vm158, %v84, 0
  %v283 = vsel %vm158, %v85, 0
  %v286 = vsel %vm158, %v86, 0
  %v289 = vsel %vm158, %v87, 0
  %v292 = vsel %vm158, %v88, 0
  %v295 = vsel %vm158, %v89, 0
  %v298 = vsel %vm158, %v90, 0
  %v301 = vsel %vm158, %v91, 0
  %v304 = vsel %vm158, %v92, 0
  %v307 = vsel %vm158, %v93, 0
  %v310 = vsel %vm158, %v94, 0
  %v313 = vsel %vm158, %v95, 0
  %v316 = vsel %vm158, %v96, 0
  %v319 = vsel %vm158, %v97, 0
  %v322 = vsel %vm158, %v98, 0
  %v325 = vsel %vm158, %v99, 0
  %v328 = vsel %vm158, %v100, 0
  %v331 = vsel %vm158, %v101, 0
  %v334 = vsel %vm158, %v102, 0
  %v337 = vsel %vm158, %v103, 0
  %v340 = vsel %vm158, %v104, 0
  %v343 = vsel %vm158, %v105, 0
  %v346 = vsel %vm158, %v106, 0
  %v349 = vsel %vm158, %v107, 0
  %v352 = vsel %vm158, %v108, 0
  %v355 = vsel %vm158, %v109, 0
  %v358 = vsel %vm158, %v110, 0
  %v361 = vsel %vm158, %v111, 0
  %v364 = vsel %vm158, %v112, 0
  %v367 = vsel %vm158, %v113, 0
  %v370 = vsel %vm158, %v114, 0
  %v373 = vsel %vm158, %v115, 0
  %v376 = vsel %vm158, %v116, 0
  %v379 = vsel %vm158, %v117, 0
  %v382 = vsel %vm158, %v118, 0
  %v385 = vsel %vm158, %v119, 0
  %v388 = vsel %vm158, %v120, 0
  %v391 = vsel %vm158, %v121, 0
  %v394 = vsel %vm158, %v122, 0
  %v397 = vsel %vm158, %v123, 0
  %v400 = vsel %vm158, %v124, 0
  %v403 = vsel %vm158, %v125, 0
  %v406 = vsel %vm158, %v126, 0
  %v409 = vsel %vm158, %v127, 0
  %v412 = vsel %vm158, %v128, 0
  %v415 = vsel %vm158, %v129, 0
  %v418 = vsel %vm158, %v130, 0
  %v421 = vsel %vm158, %v131, 0
  %v424 = vsel %vm158, %v132, 0
  %v427 = vsel %vm158, %v133, 0
  %v430 = vsel %vm158, %v134, 0
  %v433 = vsel %vm158, %v135, 0
  %v436 = vsel %vm158, %v136, 0
  %v439 = vsel %vm158, %v137, 0
  %v442 = vsel %vm158, %v138, 0
  %v445 = vsel %vm158, %v139, 0
  %v448 = vsel %vm158, %v140, 0
  %v451 = vsel %vm158, %v141, 0
  %v454 = vsel %vm158, %v142, 0
  %v457 = vsel %vm158, %v143, 0
  %vm459 = vcmask 1042432
  %v461 = vsel %vm459, %v153, 0
  %463 = vmatpush.msra.mxu0 0.0
  %464 = vmatpush.msra.mxu0 0.0
  %465 = vmatpush.msra.mxu0 0.0
  %466 = vmatpush.msra.mxu0 0.0
  %467 = vmatpush.msra.mxu0 0.0
  %468 = vmatpush.msra.mxu0 0.0
  %469 = vmatpush.msra.mxu0 %v461
  %470 = vmatpush.msra.mxu0 %v152
  %471 = vmatpush.msra.mxu0 %v151
  %472 = vmatpush.msra.mxu0 %v150
  %473 = vmatpush.msra.mxu0 %v149
  %474 = vmatpush.msra.mxu0 %v148
  %475 = vmatpush.msra.mxu0 %v147
  %476 = vmatpush.msra.mxu0 %v146
  %477 = vmatpush.msra.mxu0 %v145
  %478 = vmatpush.msra.mxu0 %v144
  %479 = vmatmul.f32.gmra.mxu0 %v160
  %v480 = vpop.f32.mrf.mxu0
  %v481 = vadd.f32 %v156, %v480
  %482 = vmatmul.f32.gmra.mxu0 %v163
  %v483 = vpop.f32.mrf.mxu0
  %v484 = vadd.f32 %v156, %v483
  %485 = vmatmul.f32.gmra.mxu0 %v166
  %v486 = vpop.f32.mrf.mxu0
  %v487 = vadd.f32 %v156, %v486
  %488 = vmatmul.f32.gmra.mxu0 %v169
  %v489 = vpop.f32.mrf.mxu0
  %v490 = vadd.f32 %v156, %v489
  %491 = vmatmul.f32.gmra.mxu0 %v172
  %v492 = vpop.f32.mrf.mxu0
  %v493 = vadd.f32 %v156, %v492
  %494 = vmatmul.f32.gmra.mxu0 %v175
  %v495 = vpop.f32.mrf.mxu0
  %v496 = vadd.f32 %v156, %v495
  %497 = vmatmul.f32.gmra.mxu0 %v178
  %v498 = vpop.f32.mrf.mxu0
  %v499 = vadd.f32 %v156, %v498
  %500 = vmatmul.f32.gmra.mxu0 %v181
  %v501 = vpop.f32.mrf.mxu0
  %v502 = vadd.f32 %v156, %v501
  %503 = vmatmul.f32.gmra.mxu0 %v184
  %v504 = vpop.f32.mrf.mxu0
  %v505 = vadd.f32 %v156, %v504
  %506 = vmatmul.f32.gmra.mxu0 %v187
  %v507 = vpop.f32.mrf.mxu0
  %v508 = vadd.f32 %v156, %v507
  %509 = vmatmul.f32.gmra.mxu0 %v190
  %v510 = vpop.f32.mrf.mxu0
  %v511 = vadd.f32 %v156, %v510
  %512 = vmatmul.f32.gmra.mxu0 %v193
  %v513 = vpop.f32.mrf.mxu0
  %v514 = vadd.f32 %v156, %v513
  %515 = vmatmul.f32.gmra.mxu0 %v196
  %v516 = vpop.f32.mrf.mxu0
  %v517 = vadd.f32 %v156, %v516
  %518 = vmatmul.f32.gmra.mxu0 %v199
  %v519 = vpop.f32.mrf.mxu0
  %v520 = vadd.f32 %v156, %v519
  %521 = vmatmul.f32.gmra.mxu0 %v202
  %v522 = vpop.f32.mrf.mxu0
  %v523 = vadd.f32 %v156, %v522
  %524 = vmatmul.f32.gmra.mxu0 %v205
  %v525 = vpop.f32.mrf.mxu0
  %v526 = vadd.f32 %v156, %v525
  %527 = vmatmul.f32.gmra.mxu0 %v208
  %v528 = vpop.f32.mrf.mxu0
  %v529 = vadd.f32 %v156, %v528
  %530 = vmatmul.f32.gmra.mxu0 %v211
  %v531 = vpop.f32.mrf.mxu0
  %v532 = vadd.f32 %v156, %v531
  %533 = vmatmul.f32.gmra.mxu0 %v214
  %v534 = vpop.f32.mrf.mxu0
  %v535 = vadd.f32 %v156, %v534
  %536 = vmatmul.f32.gmra.mxu0 %v217
  %v537 = vpop.f32.mrf.mxu0
  %v538 = vadd.f32 %v156, %v537
  %539 = vmatmul.f32.gmra.mxu0 %v220
  %v540 = vpop.f32.mrf.mxu0
  %v541 = vadd.f32 %v156, %v540
  %542 = vmatmul.f32.gmra.mxu0 %v223
  %v543 = vpop.f32.mrf.mxu0
  %v544 = vadd.f32 %v156, %v543
  %545 = vmatmul.f32.gmra.mxu0 %v226
  %v546 = vpop.f32.mrf.mxu0
  %v547 = vadd.f32 %v156, %v546
  %548 = vmatmul.f32.gmra.mxu0 %v229
  %v549 = vpop.f32.mrf.mxu0
  %v550 = vadd.f32 %v156, %v549
  %551 = vmatmul.f32.gmra.mxu0 %v232
  %v552 = vpop.f32.mrf.mxu0
  %v553 = vadd.f32 %v156, %v552
  %554 = vmatmul.f32.gmra.mxu0 %v235
  %v555 = vpop.f32.mrf.mxu0
  %v556 = vadd.f32 %v156, %v555
  %557 = vmatmul.f32.gmra.mxu0 %v238
  %v558 = vpop.f32.mrf.mxu0
  %v559 = vadd.f32 %v156, %v558
  %560 = vmatmul.f32.gmra.mxu0 %v241
  %v561 = vpop.f32.mrf.mxu0
  %v562 = vadd.f32 %v156, %v561
  %563 = vmatmul.f32.gmra.mxu0 %v244
  %v564 = vpop.f32.mrf.mxu0
  %v565 = vadd.f32 %v156, %v564
  %566 = vmatmul.f32.gmra.mxu0 %v247
  %v567 = vpop.f32.mrf.mxu0
  %v568 = vadd.f32 %v156, %v567
  %569 = vmatmul.f32.gmra.mxu0 %v250
  %v570 = vpop.f32.mrf.mxu0
  %v571 = vadd.f32 %v156, %v570
  %572 = vmatmul.f32.gmra.mxu0 %v253
  %v573 = vpop.f32.mrf.mxu0
  %v574 = vadd.f32 %v156, %v573
  %575 = vmatmul.f32.gmra.mxu0 %v256
  %v576 = vpop.f32.mrf.mxu0
  %v577 = vadd.f32 %v156, %v576
  %578 = vmatmul.f32.gmra.mxu0 %v259
  %v579 = vpop.f32.mrf.mxu0
  %v580 = vadd.f32 %v156, %v579
  %581 = vmatmul.f32.gmra.mxu0 %v262
  %v582 = vpop.f32.mrf.mxu0
  %v583 = vadd.f32 %v156, %v582
  %584 = vmatmul.f32.gmra.mxu0 %v265
  %v585 = vpop.f32.mrf.mxu0
  %v586 = vadd.f32 %v156, %v585
  %587 = vmatmul.f32.gmra.mxu0 %v268
  %v588 = vpop.f32.mrf.mxu0
  %v589 = vadd.f32 %v156, %v588
  %590 = vmatmul.f32.gmra.mxu0 %v271
  %v591 = vpop.f32.mrf.mxu0
  %v592 = vadd.f32 %v156, %v591
  %593 = vmatmul.f32.gmra.mxu0 %v274
  %v594 = vpop.f32.mrf.mxu0
  %v595 = vadd.f32 %v156, %v594
  %596 = vmatmul.f32.gmra.mxu0 %v277
  %v597 = vpop.f32.mrf.mxu0
  %v598 = vadd.f32 %v156, %v597
  %599 = vmatmul.f32.gmra.mxu0 %v280
  %v600 = vpop.f32.mrf.mxu0
  %v601 = vadd.f32 %v156, %v600
  %602 = vmatmul.f32.gmra.mxu0 %v283
  %v603 = vpop.f32.mrf.mxu0
  %v604 = vadd.f32 %v156, %v603
  %605 = vmatmul.f32.gmra.mxu0 %v286
  %v606 = vpop.f32.mrf.mxu0
  %v607 = vadd.f32 %v156, %v606
  %608 = vmatmul.f32.gmra.mxu0 %v289
  %v609 = vpop.f32.mrf.mxu0
  %v610 = vadd.f32 %v156, %v609
  %611 = vmatmul.f32.gmra.mxu0 %v292
  %v612 = vpop.f32.mrf.mxu0
  %v613 = vadd.f32 %v156, %v612
  %614 = vmatmul.f32.gmra.mxu0 %v295
  %v615 = vpop.f32.mrf.mxu0
  %v616 = vadd.f32 %v156, %v615
  %617 = vmatmul.f32.gmra.mxu0 %v298
  %v618 = vpop.f32.mrf.mxu0
  %v619 = vadd.f32 %v156, %v618
  %620 = vmatmul.f32.gmra.mxu0 %v301
  %v621 = vpop.f32.mrf.mxu0
  %v622 = vadd.f32 %v156, %v621
  %623 = vmatmul.f32.gmra.mxu0 %v304
  %v624 = vpop.f32.mrf.mxu0
  %v625 = vadd.f32 %v156, %v624
  %626 = vmatmul.f32.gmra.mxu0 %v307
  %v627 = vpop.f32.mrf.mxu0
  %v628 = vadd.f32 %v156, %v627
  %629 = vmatmul.f32.gmra.mxu0 %v310
  %v630 = vpop.f32.mrf.mxu0
  %v631 = vadd.f32 %v156, %v630
  %632 = vmatmul.f32.gmra.mxu0 %v313
  %v633 = vpop.f32.mrf.mxu0
  %v634 = vadd.f32 %v156, %v633
  %635 = vmatmul.f32.gmra.mxu0 %v316
  %v636 = vpop.f32.mrf.mxu0
  %v637 = vadd.f32 %v156, %v636
  %638 = vmatmul.f32.gmra.mxu0 %v319
  %v639 = vpop.f32.mrf.mxu0
  %v640 = vadd.f32 %v156, %v639
  %641 = vmatmul.f32.gmra.mxu0 %v322
  %v642 = vpop.f32.mrf.mxu0
  %v643 = vadd.f32 %v156, %v642
  %644 = vmatmul.f32.gmra.mxu0 %v325
  %v645 = vpop.f32.mrf.mxu0
  %v646 = vadd.f32 %v156, %v645
  %647 = vmatmul.f32.gmra.mxu0 %v328
  %v648 = vpop.f32.mrf.mxu0
  %v649 = vadd.f32 %v156, %v648
  %650 = vmatmul.f32.gmra.mxu0 %v331
  %v651 = vpop.f32.mrf.mxu0
  %v652 = vadd.f32 %v156, %v651
  %653 = vmatmul.f32.gmra.mxu0 %v334
  %v654 = vpop.f32.mrf.mxu0
  %v655 = vadd.f32 %v156, %v654
  %656 = vmatmul.f32.gmra.mxu0 %v337
  %v657 = vpop.f32.mrf.mxu0
  %v658 = vadd.f32 %v156, %v657
  %659 = vmatmul.f32.gmra.mxu0 %v340
  %v660 = vpop.f32.mrf.mxu0
  %v661 = vadd.f32 %v156, %v660
  %662 = vmatmul.f32.gmra.mxu0 %v343
  %v663 = vpop.f32.mrf.mxu0
  %v664 = vadd.f32 %v156, %v663
  %665 = vmatmul.f32.gmra.mxu0 %v346
  %v666 = vpop.f32.mrf.mxu0
  %v667 = vadd.f32 %v156, %v666
  %668 = vmatmul.f32.gmra.mxu0 %v349
  %v669 = vpop.f32.mrf.mxu0
  %v670 = vadd.f32 %v156, %v669
  %671 = vmatmul.f32.gmra.mxu0 %v352
  %v672 = vpop.f32.mrf.mxu0
  %v673 = vadd.f32 %v156, %v672
  %674 = vmatmul.f32.gmra.mxu0 %v355
  %v675 = vpop.f32.mrf.mxu0
  %v676 = vadd.f32 %v156, %v675
  %677 = vmatmul.f32.gmra.mxu0 %v358
  %v678 = vpop.f32.mrf.mxu0
  %v679 = vadd.f32 %v156, %v678
  %680 = vmatmul.f32.gmra.mxu0 %v361
  %v681 = vpop.f32.mrf.mxu0
  %v682 = vadd.f32 %v156, %v681
  %683 = vmatmul.f32.gmra.mxu0 %v364
  %v684 = vpop.f32.mrf.mxu0
  %v685 = vadd.f32 %v156, %v684
  %686 = vmatmul.f32.gmra.mxu0 %v367
  %v687 = vpop.f32.mrf.mxu0
  %v688 = vadd.f32 %v156, %v687
  %689 = vmatmul.f32.gmra.mxu0 %v370
  %v690 = vpop.f32.mrf.mxu0
  %v691 = vadd.f32 %v156, %v690
  %692 = vmatmul.f32.gmra.mxu0 %v373
  %v693 = vpop.f32.mrf.mxu0
  %v694 = vadd.f32 %v156, %v693
  %695 = vmatmul.f32.gmra.mxu0 %v376
  %v696 = vpop.f32.mrf.mxu0
  %v697 = vadd.f32 %v156, %v696
  %698 = vmatmul.f32.gmra.mxu0 %v379
  %v699 = vpop.f32.mrf.mxu0
  %v700 = vadd.f32 %v156, %v699
  %701 = vmatmul.f32.gmra.mxu0 %v382
  %v702 = vpop.f32.mrf.mxu0
  %v703 = vadd.f32 %v156, %v702
  %704 = vmatmul.f32.gmra.mxu0 %v385
  %v705 = vpop.f32.mrf.mxu0
  %v706 = vadd.f32 %v156, %v705
  %707 = vmatmul.f32.gmra.mxu0 %v388
  %v708 = vpop.f32.mrf.mxu0
  %v709 = vadd.f32 %v156, %v708
  %710 = vmatmul.f32.gmra.mxu0 %v391
  %v711 = vpop.f32.mrf.mxu0
  %v712 = vadd.f32 %v156, %v711
  %713 = vmatmul.f32.gmra.mxu0 %v394
  %v714 = vpop.f32.mrf.mxu0
  %v715 = vadd.f32 %v156, %v714
  %716 = vmatmul.f32.gmra.mxu0 %v397
  %v717 = vpop.f32.mrf.mxu0
  %v718 = vadd.f32 %v156, %v717
  %719 = vmatmul.f32.gmra.mxu0 %v400
  %v720 = vpop.f32.mrf.mxu0
  %v721 = vadd.f32 %v156, %v720
  %722 = vmatmul.f32.gmra.mxu0 %v403
  %v723 = vpop.f32.mrf.mxu0
  %v724 = vadd.f32 %v156, %v723
  %725 = vmatmul.f32.gmra.mxu0 %v406
  %v726 = vpop.f32.mrf.mxu0
  %v727 = vadd.f32 %v156, %v726
  %728 = vmatmul.f32.gmra.mxu0 %v409
  %v729 = vpop.f32.mrf.mxu0
  %v730 = vadd.f32 %v156, %v729
  %731 = vmatmul.f32.gmra.mxu0 %v412
  %v732 = vpop.f32.mrf.mxu0
  %v733 = vadd.f32 %v156, %v732
  %734 = vmatmul.f32.gmra.mxu0 %v415
  %v735 = vpop.f32.mrf.mxu0
  %v736 = vadd.f32 %v156, %v735
  %737 = vmatmul.f32.gmra.mxu0 %v418
  %v738 = vpop.f32.mrf.mxu0
  %v739 = vadd.f32 %v156, %v738
  %740 = vmatmul.f32.gmra.mxu0 %v421
  %v741 = vpop.f32.mrf.mxu0
  %v742 = vadd.f32 %v156, %v741
  %743 = vmatmul.f32.gmra.mxu0 %v424
  %v744 = vpop.f32.mrf.mxu0
  %v745 = vadd.f32 %v156, %v744
  %746 = vmatmul.f32.gmra.mxu0 %v427
  %v747 = vpop.f32.mrf.mxu0
  %v748 = vadd.f32 %v156, %v747
  %749 = vmatmul.f32.gmra.mxu0 %v430
  %v750 = vpop.f32.mrf.mxu0
  %v751 = vadd.f32 %v156, %v750
  %752 = vmatmul.f32.gmra.mxu0 %v433
  %v753 = vpop.f32.mrf.mxu0
  %v754 = vadd.f32 %v156, %v753
  %755 = vmatmul.f32.gmra.mxu0 %v436
  %v756 = vpop.f32.mrf.mxu0
  %v757 = vadd.f32 %v156, %v756
  %758 = vmatmul.f32.gmra.mxu0 %v439
  %v759 = vpop.f32.mrf.mxu0
  %v760 = vadd.f32 %v156, %v759
  %761 = vmatmul.f32.gmra.mxu0 %v442
  %v762 = vpop.f32.mrf.mxu0
  %v763 = vadd.f32 %v156, %v762
  %764 = vmatmul.f32.gmra.mxu0 %v445
  %v765 = vpop.f32.mrf.mxu0
  %v766 = vadd.f32 %v156, %v765
  %767 = vmatmul.f32.gmra.mxu0 %v448
  %v768 = vpop.f32.mrf.mxu0
  %v769 = vadd.f32 %v156, %v768
  %770 = vmatmul.f32.gmra.mxu0 %v451
  %v771 = vpop.f32.mrf.mxu0
  %v772 = vadd.f32 %v156, %v771
  %773 = vmatmul.f32.gmra.mxu0 %v454
  %v774 = vpop.f32.mrf.mxu0
  %v775 = vadd.f32 %v156, %v774
  %776 = vmatmul.f32.gmra.mxu0 %v457
  %v777 = vpop.f32.mrf.mxu0
  %v778 = vadd.f32 %v156, %v777
  %779 = vdwg.mxu0
  %v780 = vmax.f32 %v481, 0.0
  %v781 = vmax.f32 %v484, 0.0
  %v782 = vmax.f32 %v487, 0.0
  %v783 = vmax.f32 %v490, 0.0
  %v784 = vmax.f32 %v493, 0.0
  %v785 = vmax.f32 %v496, 0.0
  %v786 = vmax.f32 %v499, 0.0
  %v787 = vmax.f32 %v502, 0.0
  %v788 = vmax.f32 %v505, 0.0
  %v789 = vmax.f32 %v508, 0.0
  %v790 = vmax.f32 %v511, 0.0
  %v791 = vmax.f32 %v514, 0.0
  %v792 = vmax.f32 %v517, 0.0
  %v793 = vmax.f32 %v520, 0.0
  %v794 = vmax.f32 %v523, 0.0
  %v795 = vmax.f32 %v526, 0.0
  %v796 = vmax.f32 %v529, 0.0
  %v797 = vmax.f32 %v532, 0.0
  %v798 = vmax.f32 %v535, 0.0
  %v799 = vmax.f32 %v538, 0.0
  %v800 = vmax.f32 %v541, 0.0
  %v801 = vmax.f32 %v544, 0.0
  %v802 = vmax.f32 %v547, 0.0
  %v803 = vmax.f32 %v550, 0.0
  %v804 = vmax.f32 %v553, 0.0
  %v805 = vmax.f32 %v556, 0.0
  %v806 = vmax.f32 %v559, 0.0
  %v807 = vmax.f32 %v562, 0.0
  %v808 = vmax.f32 %v565, 0.0
  %v809 = vmax.f32 %v568, 0.0
  %v810 = vmax.f32 %v571, 0.0
  %v811 = vmax.f32 %v574, 0.0
  %v812 = vmax.f32 %v577, 0.0
  %v813 = vmax.f32 %v580, 0.0
  %v814 = vmax.f32 %v583, 0.0
  %v815 = vmax.f32 %v586, 0.0
  %v816 = vmax.f32 %v589, 0.0
  %v817 = vmax.f32 %v592, 0.0
  %v818 = vmax.f32 %v595, 0.0
  %v819 = vmax.f32 %v598, 0.0
  %v820 = vmax.f32 %v601, 0.0
  %v821 = vmax.f32 %v604, 0.0
  %v822 = vmax.f32 %v607, 0.0
  %v823 = vmax.f32 %v610, 0.0
  %v824 = vmax.f32 %v613, 0.0
  %v825 = vmax.f32 %v616, 0.0
  %v826 = vmax.f32 %v619, 0.0
  %v827 = vmax.f32 %v622, 0.0
  %v828 = vmax.f32 %v625, 0.0
  %v829 = vmax.f32 %v628, 0.0
  %v830 = vmax.f32 %v631, 0.0
  %v831 = vmax.f32 %v634, 0.0
  %v832 = vmax.f32 %v637, 0.0
  %v833 = vmax.f32 %v640, 0.0
  %v834 = vmax.f32 %v643, 0.0
  %v835 = vmax.f32 %v646, 0.0
  %v836 = vmax.f32 %v649, 0.0
  %v837 = vmax.f32 %v652, 0.0
  %v838 = vmax.f32 %v655, 0.0
  %v839 = vmax.f32 %v658, 0.0
  %v840 = vmax.f32 %v661, 0.0
  %v841 = vmax.f32 %v664, 0.0
  %v842 = vmax.f32 %v667, 0.0
  %v843 = vmax.f32 %v670, 0.0
  %v844 = vmax.f32 %v673, 0.0
  %v845 = vmax.f32 %v676, 0.0
  %v846 = vmax.f32 %v679, 0.0
  %v847 = vmax.f32 %v682, 0.0
  %v848 = vmax.f32 %v685, 0.0
  %v849 = vmax.f32 %v688, 0.0
  %v850 = vmax.f32 %v691, 0.0
  %v851 = vmax.f32 %v694, 0.0
  %v852 = vmax.f32 %v697, 0.0
  %v853 = vmax.f32 %v700, 0.0
  %v854 = vmax.f32 %v703, 0.0
  %v855 = vmax.f32 %v706, 0.0
  %v856 = vmax.f32 %v709, 0.0
  %v857 = vmax.f32 %v712, 0.0
  %v858 = vmax.f32 %v715, 0.0
  %v859 = vmax.f32 %v718, 0.0
  %v860 = vmax.f32 %v721, 0.0
  %v861 = vmax.f32 %v724, 0.0
  %v862 = vmax.f32 %v727, 0.0
  %v863 = vmax.f32 %v730, 0.0
  %v864 = vmax.f32 %v733, 0.0
  %v865 = vmax.f32 %v736, 0.0
  %v866 = vmax.f32 %v739, 0.0
  %v867 = vmax.f32 %v742, 0.0
  %v868 = vmax.f32 %v745, 0.0
  %v869 = vmax.f32 %v748, 0.0
  %v870 = vmax.f32 %v751, 0.0
  %v871 = vmax.f32 %v754, 0.0
  %v872 = vmax.f32 %v757, 0.0
  %v873 = vmax.f32 %v760, 0.0
  %v874 = vmax.f32 %v763, 0.0
  %v875 = vmax.f32 %v766, 0.0
  %v876 = vmax.f32 %v769, 0.0
  %v877 = vmax.f32 %v772, 0.0
  %v878 = vmax.f32 %v775, 0.0
  %v879 = vmax.f32 %v778, 0.0
  %vm880 = vcmask 244736
  %881 = vst.msk [vmem:[#allocation2] sm:$0xff] %vm880, %v780
  %882 = vst.msk [vmem:[#allocation2 + $0x30] sm:$0xff] %vm880, %v781
  %883 = vst.msk [vmem:[#allocation2 + $0x60] sm:$0xff] %vm880, %v782
  %884 = vst.msk [vmem:[#allocation2 + $0x90] sm:$0xff] %vm880, %v783
  %889 = vrot.lane.b32.xlu0 %v784, 30
  %v890 = vpop.permute.xlu0 %889
  %891 = vrot.lane.b32.xlu0 %v785, 30
  %v892 = vpop.permute.xlu0 %891
  %893 = vrot.lane.b32.xlu0 %v786, 30
  %v894 = vpop.permute.xlu0 %893
  %895 = vrot.lane.b32.xlu0 %v787, 30
  %v896 = vpop.permute.xlu0 %895
  %vm901 = vcmask 490736
  %902 = vst.msk [vmem:[#allocation2] sm:$0xff] %vm901, %v890
  %903 = vst.msk [vmem:[#allocation2 + $0x30] sm:$0xff] %vm901, %v892
  %904 = vst.msk [vmem:[#allocation2 + $0x60] sm:$0xff] %vm901, %v894
  %905 = vst.msk [vmem:[#allocation2 + $0x90] sm:$0xff] %vm901, %v896
  %910 = vrot.lane.b32.xlu0 %v788, 60
  %v911 = vpop.permute.xlu0 %910
  %912 = vrot.lane.b32.xlu0 %v789, 60
  %v913 = vpop.permute.xlu0 %912
  %914 = vrot.lane.b32.xlu0 %v790, 60
  %v915 = vpop.permute.xlu0 %914
  %916 = vrot.lane.b32.xlu0 %v791, 60
  %v917 = vpop.permute.xlu0 %916
  %vm922 = vcmask 736736
  %923 = vst.msk [vmem:[#allocation2] sm:$0xff] %vm922, %v911
  %924 = vst.msk [vmem:[#allocation2 + $0x30] sm:$0xff] %vm922, %v913
  %925 = vst.msk [vmem:[#allocation2 + $0x60] sm:$0xff] %vm922, %v915
  %926 = vst.msk [vmem:[#allocation2 + $0x90] sm:$0xff] %vm922, %v917
  %931 = vrot.lane.b32.xlu0 %v792, 90
  %v932 = vpop.permute.xlu0 %931
  %933 = vrot.lane.b32.xlu0 %v793, 90
  %v934 = vpop.permute.xlu0 %933
  %935 = vrot.lane.b32.xlu0 %v794, 90
  %v936 = vpop.permute.xlu0 %935
  %937 = vrot.lane.b32.xlu0 %v795, 90
  %v938 = vpop.permute.xlu0 %937
  %vm943 = vcmask 982736
  %944 = vst.msk [vmem:[#allocation2] sm:$0xff] %vm943, %v932
  %945 = vst.msk [vmem:[#allocation2 + $0x30] sm:$0xff] %vm943, %v934
  %946 = vst.msk [vmem:[#allocation2 + $0x60] sm:$0xff] %vm943, %v936
  %947 = vst.msk [vmem:[#allocation2 + $0x90] sm:$0xff] %vm943, %v938
  %952 = vrot.lane.b32.xlu0 %v796, 120
  %v953 = vpop.permute.xlu0 %952
  %954 = vrot.lane.b32.xlu0 %v797, 120
  %v955 = vpop.permute.xlu0 %954
  %956 = vrot.lane.b32.xlu0 %v798, 120
  %v957 = vpop.permute.xlu0 %956
  %958 = vrot.lane.b32.xlu0 %v799, 120
  %v959 = vpop.permute.xlu0 %958
  %vm964 = vcmask 1048512
  %965 = vst.msk [vmem:[#allocation2] sm:$0xff] %vm964, %v953
  %vm966 = vcmask 179200
  %967 = vst.msk [vmem:[#allocation2 + $0x8] sm:$0xff] %vm966, %v953
  %968 = vst.msk [vmem:[#allocation2 + $0x30] sm:$0xff] %vm964, %v955
  %969 = vst.msk [vmem:[#allocation2 + $0x38] sm:$0xff] %vm966, %v955
  %970 = vst.msk [vmem:[#allocation2 + $0x60] sm:$0xff] %vm964, %v957
  %971 = vst.msk [vmem:[#allocation2 + $0x68] sm:$0xff] %vm966, %v957
  %972 = vst.msk [vmem:[#allocation2 + $0x90] sm:$0xff] %vm964, %v959
  %973 = vst.msk [vmem:[#allocation2 + $0x98] sm:$0xff] %vm966, %v959
  %978 = vrot.lane.b32.xlu0 %v800, 22
  %v979 = vpop.permute.xlu0 %978
  %980 = vrot.lane.b32.xlu0 %v801, 22
  %v981 = vpop.permute.xlu0 %980
  %982 = vrot.lane.b32.xlu0 %v802, 22
  %v983 = vpop.permute.xlu0 %982
  %984 = vrot.lane.b32.xlu0 %v803, 22
  %v985 = vpop.permute.xlu0 %984
  %vm990 = vcmask 425136
  %991 = vst.msk [vmem:[#allocation2 + $0x8] sm:$0xff] %vm990, %v979
  %992 = vst.msk [vmem:[#allocation2 + $0x38] sm:$0xff] %vm990, %v981
  %993 = vst.msk [vmem:[#allocation2 + $0x68] sm:$0xff] %vm990, %v983
  %994 = vst.msk [vmem:[#allocation2 + $0x98] sm:$0xff] %vm990, %v985
  %999 = vrot.lane.b32.xlu0 %v804, 52
  %v1000 = vpop.permute.xlu0 %999
  %1001 = vrot.lane.b32.xlu0 %v805, 52
  %v1002 = vpop.permute.xlu0 %1001
  %1003 = vrot.lane.b32.xlu0 %v806, 52
  %v1004 = vpop.permute.xlu0 %1003
  %1005 = vrot.lane.b32.xlu0 %v807, 52
  %v1006 = vpop.permute.xlu0 %1005
  %vm1011 = vcmask 671136
  %1012 = vst.msk [vmem:[#allocation2 + $0x8] sm:$0xff] %vm1011, %v1000
  %1013 = vst.msk [vmem:[#allocation2 + $0x38] sm:$0xff] %vm1011, %v1002
  %1014 = vst.msk [vmem:[#allocation2 + $0x68] sm:$0xff] %vm1011, %v1004
  %1015 = vst.msk [vmem:[#allocation2 + $0x98] sm:$0xff] %vm1011, %v1006
  %1020 = vrot.lane.b32.xlu0 %v808, 82
  %v1021 = vpop.permute.xlu0 %1020
  %1022 = vrot.lane.b32.xlu0 %v809, 82
  %v1023 = vpop.permute.xlu0 %1022
  %1024 = vrot.lane.b32.xlu0 %v810, 82
  %v1025 = vpop.permute.xlu0 %1024
  %1026 = vrot.lane.b32.xlu0 %v811, 82
  %v1027 = vpop.permute.xlu0 %1026
  %vm1032 = vcmask 917136
  %1033 = vst.msk [vmem:[#allocation2 + $0x8] sm:$0xff] %vm1032, %v1021
  %1034 = vst.msk [vmem:[#allocation2 + $0x38] sm:$0xff] %vm1032, %v1023
  %1035 = vst.msk [vmem:[#allocation2 + $0x68] sm:$0xff] %vm1032, %v1025
  %1036 = vst.msk [vmem:[#allocation2 + $0x98] sm:$0xff] %vm1032, %v1027
  %1041 = vrot.lane.b32.xlu0 %v812, 112
  %v1042 = vpop.permute.xlu0 %1041
  %1043 = vrot.lane.b32.xlu0 %v813, 112
  %v1044 = vpop.permute.xlu0 %1043
  %1045 = vrot.lane.b32.xlu0 %v814, 112
  %v1046 = vpop.permute.xlu0 %1045
  %1047 = vrot.lane.b32.xlu0 %v815, 112
  %v1048 = vpop.permute.xlu0 %1047
  %vm1053 = vcmask 1048448
  %1054 = vst.msk [vmem:[#allocation2 + $0x8] sm:$0xff] %vm1053, %v1042
  %vm1055 = vcmask 113664
  %1056 = vst.msk [vmem:[#allocation2 + $0x10] sm:$0xff] %vm1055, %v1042
  %1057 = vst.msk [vmem:[#allocation2 + $0x38] sm:$0xff] %vm1053, %v1044
  %1058 = vst.msk [vmem:[#allocation2 + $0x40] sm:$0xff] %vm1055, %v1044
  %1059 = vst.msk [vmem:[#allocation2 + $0x68] sm:$0xff] %vm1053, %v1046
  %1060 = vst.msk [vmem:[#allocation2 + $0x70] sm:$0xff] %vm1055, %v1046
  %1061 = vst.msk [vmem:[#allocation2 + $0x98] sm:$0xff] %vm1053, %v1048
  %1062 = vst.msk [vmem:[#allocation2 + $0xa0] sm:$0xff] %vm1055, %v1048
  %1067 = vrot.lane.b32.xlu0 %v816, 14
  %v1068 = vpop.permute.xlu0 %1067
  %1069 = vrot.lane.b32.xlu0 %v817, 14
  %v1070 = vpop.permute.xlu0 %1069
  %1071 = vrot.lane.b32.xlu0 %v818, 14
  %v1072 = vpop.permute.xlu0 %1071
  %1073 = vrot.lane.b32.xlu0 %v819, 14
  %v1074 = vpop.permute.xlu0 %1073
  %vm1079 = vcmask 359536
  %1080 = vst.msk [vmem:[#allocation2 + $0x10] sm:$0xff] %vm1079, %v1068
  %1081 = vst.msk [vmem:[#allocation2 + $0x40] sm:$0xff] %vm1079, %v1070
  %1082 = vst.msk [vmem:[#allocation2 + $0x70] sm:$0xff] %vm1079, %v1072
  %1083 = vst.msk [vmem:[#allocation2 + $0xa0] sm:$0xff] %vm1079, %v1074
  %1088 = vrot.lane.b32.xlu0 %v820, 44
  %v1089 = vpop.permute.xlu0 %1088
  %1090 = vrot.lane.b32.xlu0 %v821, 44
  %v1091 = vpop.permute.xlu0 %1090
  %1092 = vrot.lane.b32.xlu0 %v822, 44
  %v1093 = vpop.permute.xlu0 %1092
  %1094 = vrot.lane.b32.xlu0 %v823, 44
  %v1095 = vpop.permute.xlu0 %1094
  %vm1100 = vcmask 605536
  %1101 = vst.msk [vmem:[#allocation2 + $0x10] sm:$0xff] %vm1100, %v1089
  %1102 = vst.msk [vmem:[#allocation2 + $0x40] sm:$0xff] %vm1100, %v1091
  %1103 = vst.msk [vmem:[#allocation2 + $0x70] sm:$0xff] %vm1100, %v1093
  %1104 = vst.msk [vmem:[#allocation2 + $0xa0] sm:$0xff] %vm1100, %v1095
  %1109 = vrot.lane.b32.xlu0 %v824, 74
  %v1110 = vpop.permute.xlu0 %1109
  %1111 = vrot.lane.b32.xlu0 %v825, 74
  %v1112 = vpop.permute.xlu0 %1111
  %1113 = vrot.lane.b32.xlu0 %v826, 74
  %v1114 = vpop.permute.xlu0 %1113
  %1115 = vrot.lane.b32.xlu0 %v827, 74
  %v1116 = vpop.permute.xlu0 %1115
  %vm1121 = vcmask 851536
  %1122 = vst.msk [vmem:[#allocation2 + $0x10] sm:$0xff] %vm1121, %v1110
  %1123 = vst.msk [vmem:[#allocation2 + $0x40] sm:$0xff] %vm1121, %v1112
  %1124 = vst.msk [vmem:[#allocation2 + $0x70] sm:$0xff] %vm1121, %v1114
  %1125 = vst.msk [vmem:[#allocation2 + $0xa0] sm:$0xff] %vm1121, %v1116
  %1130 = vrot.lane.b32.xlu0 %v828, 104
  %v1131 = vpop.permute.xlu0 %1130
  %1132 = vrot.lane.b32.xlu0 %v829, 104
  %v1133 = vpop.permute.xlu0 %1132
  %1134 = vrot.lane.b32.xlu0 %v830, 104
  %v1135 = vpop.permute.xlu0 %1134
  %1136 = vrot.lane.b32.xlu0 %v831, 104
  %v1137 = vpop.permute.xlu0 %1136
  %vm1142 = vcmask 1048384
  %1143 = vst.msk [vmem:[#allocation2 + $0x10] sm:$0xff] %vm1142, %v1131
  %vm1144 = vcmask 48128
  %1145 = vst.msk [vmem:[#allocation2 + $0x18] sm:$0xff] %vm1144, %v1131
  %1146 = vst.msk [vmem:[#allocation2 + $0x40] sm:$0xff] %vm1142, %v1133
  %1147 = vst.msk [vmem:[#allocation2 + $0x48] sm:$0xff] %vm1144, %v1133
  %1148 = vst.msk [vmem:[#allocation2 + $0x70] sm:$0xff] %vm1142, %v1135
  %1149 = vst.msk [vmem:[#allocation2 + $0x78] sm:$0xff] %vm1144, %v1135
  %1150 = vst.msk [vmem:[#allocation2 + $0xa0] sm:$0xff] %vm1142, %v1137
  %1151 = vst.msk [vmem:[#allocation2 + $0xa8] sm:$0xff] %vm1144, %v1137
  %1156 = vrot.lane.b32.xlu0 %v832, 6
  %v1157 = vpop.permute.xlu0 %1156
  %1158 = vrot.lane.b32.xlu0 %v833, 6
  %v1159 = vpop.permute.xlu0 %1158
  %1160 = vrot.lane.b32.xlu0 %v834, 6
  %v1161 = vpop.permute.xlu0 %1160
  %1162 = vrot.lane.b32.xlu0 %v835, 6
  %v1163 = vpop.permute.xlu0 %1162
  %vm1168 = vcmask 293936
  %1169 = vst.msk [vmem:[#allocation2 + $0x18] sm:$0xff] %vm1168, %v1157
  %1170 = vst.msk [vmem:[#allocation2 + $0x48] sm:$0xff] %vm1168, %v1159
  %1171 = vst.msk [vmem:[#allocation2 + $0x78] sm:$0xff] %vm1168, %v1161
  %1172 = vst.msk [vmem:[#allocation2 + $0xa8] sm:$0xff] %vm1168, %v1163
  %1177 = vrot.lane.b32.xlu0 %v836, 36
  %v1178 = vpop.permute.xlu0 %1177
  %1179 = vrot.lane.b32.xlu0 %v837, 36
  %v1180 = vpop.permute.xlu0 %1179
  %1181 = vrot.lane.b32.xlu0 %v838, 36
  %v1182 = vpop.permute.xlu0 %1181
  %1183 = vrot.lane.b32.xlu0 %v839, 36
  %v1184 = vpop.permute.xlu0 %1183
  %vm1189 = vcmask 539936
  %1190 = vst.msk [vmem:[#allocation2 + $0x18] sm:$0xff] %vm1189, %v1178
  %1191 = vst.msk [vmem:[#allocation2 + $0x48] sm:$0xff] %vm1189, %v1180
  %1192 = vst.msk [vmem:[#allocation2 + $0x78] sm:$0xff] %vm1189, %v1182
  %1193 = vst.msk [vmem:[#allocation2 + $0xa8] sm:$0xff] %vm1189, %v1184
  %1198 = vrot.lane.b32.xlu0 %v840, 66
  %v1199 = vpop.permute.xlu0 %1198
  %1200 = vrot.lane.b32.xlu0 %v841, 66
  %v1201 = vpop.permute.xlu0 %1200
  %1202 = vrot.lane.b32.xlu0 %v842, 66
  %v1203 = vpop.permute.xlu0 %1202
  %1204 = vrot.lane.b32.xlu0 %v843, 66
  %v1205 = vpop.permute.xlu0 %1204
  %vm1210 = vcmask 785936
  %1211 = vst.msk [vmem:[#allocation2 + $0x18] sm:$0xff] %vm1210, %v1199
  %1212 = vst.msk [vmem:[#allocation2 + $0x48] sm:$0xff] %vm1210, %v1201
  %1213 = vst.msk [vmem:[#allocation2 + $0x78] sm:$0xff] %vm1210, %v1203
  %1214 = vst.msk [vmem:[#allocation2 + $0xa8] sm:$0xff] %vm1210, %v1205
  %1219 = vrot.lane.b32.xlu0 %v844, 96
  %v1220 = vpop.permute.xlu0 %1219
  %1221 = vrot.lane.b32.xlu0 %v845, 96
  %v1222 = vpop.permute.xlu0 %1221
  %1223 = vrot.lane.b32.xlu0 %v846, 96
  %v1224 = vpop.permute.xlu0 %1223
  %1225 = vrot.lane.b32.xlu0 %v847, 96
  %v1226 = vpop.permute.xlu0 %1225
  %vm1231 = vcmask 1031936
  %1232 = vst.msk [vmem:[#allocation2 + $0x18] sm:$0xff] %vm1231, %v1220
  %1233 = vst.msk [vmem:[#allocation2 + $0x48] sm:$0xff] %vm1231, %v1222
  %1234 = vst.msk [vmem:[#allocation2 + $0x78] sm:$0xff] %vm1231, %v1224
  %1235 = vst.msk [vmem:[#allocation2 + $0xa8] sm:$0xff] %vm1231, %v1226
  %1240 = vrot.lane.b32.xlu0 %v848, 126
  %v1241 = vpop.permute.xlu0 %1240
  %1242 = vrot.lane.b32.xlu0 %v849, 126
  %v1243 = vpop.permute.xlu0 %1242
  %1244 = vrot.lane.b32.xlu0 %v850, 126
  %v1245 = vpop.permute.xlu0 %1244
  %1246 = vrot.lane.b32.xlu0 %v851, 126
  %v1247 = vpop.permute.xlu0 %1246
  %vm1252 = vcmask 1048560
  %1253 = vst.msk [vmem:[#allocation2 + $0x18] sm:$0xff] %vm1252, %v1241
  %vm1254 = vcmask 228352
  %1255 = vst.msk [vmem:[#allocation2 + $0x20] sm:$0xff] %vm1254, %v1241
  %1256 = vst.msk [vmem:[#allocation2 + $0x48] sm:$0xff] %vm1252, %v1243
  %1257 = vst.msk [vmem:[#allocation2 + $0x50] sm:$0xff] %vm1254, %v1243
  %1258 = vst.msk [vmem:[#allocation2 + $0x78] sm:$0xff] %vm1252, %v1245
  %1259 = vst.msk [vmem:[#allocation2 + $0x80] sm:$0xff] %vm1254, %v1245
  %1260 = vst.msk [vmem:[#allocation2 + $0xa8] sm:$0xff] %vm1252, %v1247
  %1261 = vst.msk [vmem:[#allocation2 + $0xb0] sm:$0xff] %vm1254, %v1247
  %1266 = vrot.lane.b32.xlu0 %v852, 28
  %v1267 = vpop.permute.xlu0 %1266
  %1268 = vrot.lane.b32.xlu0 %v853, 28
  %v1269 = vpop.permute.xlu0 %1268
  %1270 = vrot.lane.b32.xlu0 %v854, 28
  %v1271 = vpop.permute.xlu0 %1270
  %1272 = vrot.lane.b32.xlu0 %v855, 28
  %v1273 = vpop.permute.xlu0 %1272
  %vm1278 = vcmask 474336
  %1279 = vst.msk [vmem:[#allocation2 + $0x20] sm:$0xff] %vm1278, %v1267
  %1280 = vst.msk [vmem:[#allocation2 + $0x50] sm:$0xff] %vm1278, %v1269
  %1281 = vst.msk [vmem:[#allocation2 + $0x80] sm:$0xff] %vm1278, %v1271
  %1282 = vst.msk [vmem:[#allocation2 + $0xb0] sm:$0xff] %vm1278, %v1273
  %1287 = vrot.lane.b32.xlu0 %v856, 58
  %v1288 = vpop.permute.xlu0 %1287
  %1289 = vrot.lane.b32.xlu0 %v857, 58
  %v1290 = vpop.permute.xlu0 %1289
  %1291 = vrot.lane.b32.xlu0 %v858, 58
  %v1292 = vpop.permute.xlu0 %1291
  %1293 = vrot.lane.b32.xlu0 %v859, 58
  %v1294 = vpop.permute.xlu0 %1293
  %vm1299 = vcmask 720336
  %1300 = vst.msk [vmem:[#allocation2 + $0x20] sm:$0xff] %vm1299, %v1288
  %1301 = vst.msk [vmem:[#allocation2 + $0x50] sm:$0xff] %vm1299, %v1290
  %1302 = vst.msk [vmem:[#allocation2 + $0x80] sm:$0xff] %vm1299, %v1292
  %1303 = vst.msk [vmem:[#allocation2 + $0xb0] sm:$0xff] %vm1299, %v1294
  %1308 = vrot.lane.b32.xlu0 %v860, 88
  %v1309 = vpop.permute.xlu0 %1308
  %1310 = vrot.lane.b32.xlu0 %v861, 88
  %v1311 = vpop.permute.xlu0 %1310
  %1312 = vrot.lane.b32.xlu0 %v862, 88
  %v1313 = vpop.permute.xlu0 %1312
  %1314 = vrot.lane.b32.xlu0 %v863, 88
  %v1315 = vpop.permute.xlu0 %1314
  %vm1320 = vcmask 966336
  %1321 = vst.msk [vmem:[#allocation2 + $0x20] sm:$0xff] %vm1320, %v1309
  %1322 = vst.msk [vmem:[#allocation2 + $0x50] sm:$0xff] %vm1320, %v1311
  %1323 = vst.msk [vmem:[#allocation2 + $0x80] sm:$0xff] %vm1320, %v1313
  %1324 = vst.msk [vmem:[#allocation2 + $0xb0] sm:$0xff] %vm1320, %v1315
  %1329 = vrot.lane.b32.xlu0 %v864, 118
  %v1330 = vpop.permute.xlu0 %1329
  %1331 = vrot.lane.b32.xlu0 %v865, 118
  %v1332 = vpop.permute.xlu0 %1331
  %1333 = vrot.lane.b32.xlu0 %v866, 118
  %v1334 = vpop.permute.xlu0 %1333
  %1335 = vrot.lane.b32.xlu0 %v867, 118
  %v1336 = vpop.permute.xlu0 %1335
  %vm1341 = vcmask 1048496
  %1342 = vst.msk [vmem:[#allocation2 + $0x20] sm:$0xff] %vm1341, %v1330
  %vm1343 = vcmask 162816
  %1344 = vst.msk [vmem:[#allocation2 + $0x28] sm:$0xff] %vm1343, %v1330
  %1345 = vst.msk [vmem:[#allocation2 + $0x50] sm:$0xff] %vm1341, %v1332
  %1346 = vst.msk [vmem:[#allocation2 + $0x58] sm:$0xff] %vm1343, %v1332
  %1347 = vst.msk [vmem:[#allocation2 + $0x80] sm:$0xff] %vm1341, %v1334
  %1348 = vst.msk [vmem:[#allocation2 + $0x88] sm:$0xff] %vm1343, %v1334
  %1349 = vst.msk [vmem:[#allocation2 + $0xb0] sm:$0xff] %vm1341, %v1336
  %1350 = vst.msk [vmem:[#allocation2 + $0xb8] sm:$0xff] %vm1343, %v1336
  %1355 = vrot.lane.b32.xlu0 %v868, 20
  %v1356 = vpop.permute.xlu0 %1355
  %1357 = vrot.lane.b32.xlu0 %v869, 20
  %v1358 = vpop.permute.xlu0 %1357
  %1359 = vrot.lane.b32.xlu0 %v870, 20
  %v1360 = vpop.permute.xlu0 %1359
  %1361 = vrot.lane.b32.xlu0 %v871, 20
  %v1362 = vpop.permute.xlu0 %1361
  %vm1367 = vcmask 408736
  %1368 = vst.msk [vmem:[#allocation2 + $0x28] sm:$0xff] %vm1367, %v1356
  %1369 = vst.msk [vmem:[#allocation2 + $0x58] sm:$0xff] %vm1367, %v1358
  %1370 = vst.msk [vmem:[#allocation2 + $0x88] sm:$0xff] %vm1367, %v1360
  %1371 = vst.msk [vmem:[#allocation2 + $0xb8] sm:$0xff] %vm1367, %v1362
  %1376 = vrot.lane.b32.xlu0 %v872, 50
  %v1377 = vpop.permute.xlu0 %1376
  %1378 = vrot.lane.b32.xlu0 %v873, 50
  %v1379 = vpop.permute.xlu0 %1378
  %1380 = vrot.lane.b32.xlu0 %v874, 50
  %v1381 = vpop.permute.xlu0 %1380
  %1382 = vrot.lane.b32.xlu0 %v875, 50
  %v1383 = vpop.permute.xlu0 %1382
  %vm1388 = vcmask 654736
  %1389 = vst.msk [vmem:[#allocation2 + $0x28] sm:$0xff] %vm1388, %v1377
  %1390 = vst.msk [vmem:[#allocation2 + $0x58] sm:$0xff] %vm1388, %v1379
  %1391 = vst.msk [vmem:[#allocation2 + $0x88] sm:$0xff] %vm1388, %v1381
  %1392 = vst.msk [vmem:[#allocation2 + $0xb8] sm:$0xff] %vm1388, %v1383
  %1397 = vrot.lane.b32.xlu0 %v876, 80
  %v1398 = vpop.permute.xlu0 %1397
  %1399 = vrot.lane.b32.xlu0 %v877, 80
  %v1400 = vpop.permute.xlu0 %1399
  %1401 = vrot.lane.b32.xlu0 %v878, 80
  %v1402 = vpop.permute.xlu0 %1401
  %1403 = vrot.lane.b32.xlu0 %v879, 80
  %v1404 = vpop.permute.xlu0 %1403
  %vm1409 = vcmask 900736
  %1410 = vst.msk [vmem:[#allocation2 + $0x28] sm:$0xff] %vm1409, %v1398
  %1411 = vst.msk [vmem:[#allocation2 + $0x58] sm:$0xff] %vm1409, %v1400
  %1412 = vst.msk [vmem:[#allocation2 + $0x88] sm:$0xff] %vm1409, %v1402
  %1413 = vst.msk [vmem:[#allocation2 + $0xb8] sm:$0xff] %vm1409, %v1404
  %v1414 = vld [vmem:[#allocation2] sm:$0xff]
  %v1415 = vld [vmem:[#allocation2 + $0x8] sm:$0xff]
  %v1416 = vld [vmem:[#allocation2 + $0x10] sm:$0xff]
  %v1417 = vld [vmem:[#allocation2 + $0x18] sm:$0xff]
  %v1418 = vld [vmem:[#allocation2 + $0x20] sm:$0xff]
  %v1419 = vld [vmem:[#allocation2 + $0x28] sm:$0xff]
  %v1420 = vld [vmem:[#allocation2 + $0x30] sm:$0xff]
  %v1421 = vld [vmem:[#allocation2 + $0x38] sm:$0xff]
  %v1422 = vld [vmem:[#allocation2 + $0x40] sm:$0xff]
  %v1423 = vld [vmem:[#allocation2 + $0x48] sm:$0xff]
  %v1424 = vld [vmem:[#allocation2 + $0x50] sm:$0xff]
  %v1425 = vld [vmem:[#allocation2 + $0x58] sm:$0xff]
  %v1426 = vld [vmem:[#allocation2 + $0x60] sm:$0xff]
  %v1427 = vld [vmem:[#allocation2 + $0x68] sm:$0xff]
  %v1428 = vld [vmem:[#allocation2 + $0x70] sm:$0xff]
  %v1429 = vld [vmem:[#allocation2 + $0x78] sm:$0xff]
  %v1430 = vld [vmem:[#allocation2 + $0x80] sm:$0xff]
  %v1431 = vld [vmem:[#allocation2 + $0x88] sm:$0xff]
  %v1432 = vld [vmem:[#allocation2 + $0x90] sm:$0xff]
  %v1433 = vld [vmem:[#allocation2 + $0x98] sm:$0xff]
  %v1434 = vld [vmem:[#allocation2 + $0xa0] sm:$0xff]
  %v1435 = vld [vmem:[#allocation2 + $0xa8] sm:$0xff]
  %v1436 = vld [vmem:[#allocation2 + $0xb0] sm:$0xff]
  %v1437 = vld [vmem:[#allocation2 + $0xb8] sm:$0xff]
  %v1438 = vld [vmem:[%s3] sm:$0xff]
  %v1439 = vld [vmem:[%s3 + $0x8] sm:$0xff]
  %v1440 = vld [vmem:[%s3 + $0x10] sm:$0xff]
  %v1441 = vld [vmem:[%s3 + $0x18] sm:$0xff]
  %v1442 = vld [vmem:[%s3 + $0x20] sm:$0xff]
  %v1443 = vld [vmem:[%s3 + $0x28] sm:$0xff]
  %v1444 = vld [vmem:[%s3 + $0x30] sm:$0xff]
  %v1445 = vld [vmem:[%s3 + $0x38] sm:$0xff]
  %v1446 = vld [vmem:[%s3 + $0x40] sm:$0xff]
  %v1447 = vld [vmem:[%s3 + $0x48] sm:$0xff]
  %v1448 = vld [vmem:[%s3 + $0x50] sm:$0xff]
  %v1449 = vld [vmem:[%s3 + $0x58] sm:$0xff]
  %v1450 = vld [vmem:[%s3 + $0x60] sm:$0xff]
  %v1451 = vld [vmem:[%s3 + $0x68] sm:$0xff]
  %v1452 = vld [vmem:[%s3 + $0x70] sm:$0xff]
  %v1453 = vld [vmem:[%s3 + $0x78] sm:$0xff]
  %v1454 = vld [vmem:[%s3 + $0x80] sm:$0xff]
  %v1455 = vld [vmem:[%s3 + $0x88] sm:$0xff]
  %v1456 = vld [vmem:[%s3 + $0x90] sm:$0xff]
  %v1457 = vld [vmem:[%s3 + $0x98] sm:$0xff]
  %v1458 = vld [vmem:[%s3 + $0xa0] sm:$0xff]
  %v1459 = vld [vmem:[%s3 + $0xa8] sm:$0xff]
  %v1460 = vld [vmem:[%s3 + $0xb0] sm:$0xff]
  %v1461 = vld [vmem:[%s3 + $0xb8] sm:$0xff]
  %v1462 = vld [vmem:[%s3 + $0xc0] sm:$0xff]
  %v1463 = vld [vmem:[%s3 + $0xc8] sm:$0xff]
  %v1464 = vld [vmem:[%s3 + $0xd0] sm:$0xff]
  %v1465 = vld [vmem:[%s3 + $0xd8] sm:$0xff]
  %v1466 = vld [vmem:[%s3 + $0xe0] sm:$0xff]
  %v1467 = vld [vmem:[%s3 + $0xe8] sm:$0xff]
  %v1468 = vld [vmem:[%s3 + $0xf0] sm:$0xff]
  %v1469 = vld [vmem:[%s3 + $0xf8] sm:$0xff]
  %v1470 = vld [vmem:[%s3 + $0x100] sm:$0xff]
  %v1471 = vld [vmem:[%s3 + $0x108] sm:$0xff]
  %v1472 = vld [vmem:[%s3 + $0x110] sm:$0xff]
  %v1473 = vld [vmem:[%s3 + $0x118] sm:$0xff]
  %v1474 = vld [vmem:[%s3 + $0x120] sm:$0xff]
  %v1475 = vld [vmem:[%s3 + $0x128] sm:$0xff]
  %v1476 = vld [vmem:[%s3 + $0x130] sm:$0xff]
  %v1477 = vld [vmem:[%s3 + $0x138] sm:$0xff]
  %v1478 = vld [vmem:[%s3 + $0x140] sm:$0xff]
  %v1479 = vld [vmem:[%s3 + $0x148] sm:$0xff]
  %v1480 = vld [vmem:[%s3 + $0x150] sm:$0xff]
  %v1481 = vld [vmem:[%s3 + $0x158] sm:$0xff]
  %v1482 = vld [vmem:[%s3 + $0x160] sm:$0xff]
  %v1483 = vld [vmem:[%s3 + $0x168] sm:$0xff]
  %v1484 = vld [vmem:[%s3 + $0x170] sm:$0xff]
  %v1485 = vld [vmem:[%s3 + $0x178] sm:$0xff]
  %v1486 = vld [vmem:[%s3 + $0x180] sm:$0xff]
  %v1487 = vld [vmem:[%s3 + $0x188] sm:$0xff]
  %v1488 = vld [vmem:[%s3 + $0x190] sm:$0xff]
  %v1489 = vld [vmem:[%s3 + $0x198] sm:$0xff]
  %v1490 = vld [vmem:[%s3 + $0x1a0] sm:$0xff]
  %v1491 = vld [vmem:[%s3 + $0x1a8] sm:$0xff]
  %v1492 = vld [vmem:[%s3 + $0x1b0] sm:$0xff]
  %v1493 = vld [vmem:[%s3 + $0x1b8] sm:$0xff]
  %v1494 = vld [vmem:[%s3 + $0x1c0] sm:$0xff]
  %v1495 = vld [vmem:[%s3 + $0x1c8] sm:$0xff]
  %v1496 = vld [vmem:[%s3 + $0x1d0] sm:$0xff]
  %v1497 = vld [vmem:[%s3 + $0x1d8] sm:$0xff]
  %v1498 = vld [vmem:[%s3 + $0x1e0] sm:$0xff]
  %v1499 = vld [vmem:[%s3 + $0x1e8] sm:$0xff]
  %v1500 = vld [vmem:[%s3 + $0x1f0] sm:$0xff]
  %v1501 = vld [vmem:[%s3 + $0x1f8] sm:$0xff]
  %v1502 = vld [vmem:[%s3 + $0x200] sm:$0xff]
  %v1503 = vld [vmem:[%s3 + $0x208] sm:$0xff]
  %v1504 = vld [vmem:[%s3 + $0x210] sm:$0xff]
  %v1505 = vld [vmem:[%s3 + $0x218] sm:$0xff]
  %v1506 = vld [vmem:[%s3 + $0x220] sm:$0xff]
  %v1507 = vld [vmem:[%s3 + $0x228] sm:$0xff]
  %v1508 = vld [vmem:[%s3 + $0x230] sm:$0xff]
  %v1509 = vld [vmem:[%s3 + $0x238] sm:$0xff]
  %v1510 = vld [vmem:[%s3 + $0x240] sm:$0xff]
  %v1511 = vld [vmem:[%s3 + $0x248] sm:$0xff]
  %v1512 = vld [vmem:[%s3 + $0x250] sm:$0xff]
  %v1513 = vld [vmem:[%s3 + $0x258] sm:$0xff]
  %v1514 = vld [vmem:[%s3 + $0x260] sm:$0xff]
  %v1515 = vld [vmem:[%s3 + $0x268] sm:$0xff]
  %v1516 = vld [vmem:[%s3 + $0x270] sm:$0xff]
  %v1517 = vld [vmem:[%s3 + $0x278] sm:$0xff]
  %v1518 = vld [vmem:[%s3 + $0x280] sm:$0xff]
  %v1519 = vld [vmem:[%s3 + $0x288] sm:$0xff]
  %v1520 = vld [vmem:[%s3 + $0x290] sm:$0xff]
  %v1521 = vld [vmem:[%s3 + $0x298] sm:$0xff]
  %v1522 = vld [vmem:[%s3 + $0x2a0] sm:$0xff]
  %v1523 = vld [vmem:[%s3 + $0x2a8] sm:$0xff]
  %v1524 = vld [vmem:[%s3 + $0x2b0] sm:$0xff]
  %v1525 = vld [vmem:[%s3 + $0x2b8] sm:$0xff]
  %v1526 = vld [vmem:[%s3 + $0x2c0] sm:$0xff]
  %v1527 = vld [vmem:[%s3 + $0x2c8] sm:$0xff]
  %v1528 = vld [vmem:[%s3 + $0x2d0] sm:$0xff]
  %v1529 = vld [vmem:[%s3 + $0x2d8] sm:$0xff]
  %v1530 = vld [vmem:[%s3 + $0x2e0] sm:$0xff]
  %v1531 = vld [vmem:[%s3 + $0x2e8] sm:$0x3f]
  %v1532 = vld [vmem:[%s4] sm:$0x1]
  %v1534 = vperm.slane %v1532, 0
  %vm1536 = vcmask 900096
  %v1538 = vsel %vm1536, %v1419, 0
  %v1541 = vsel %vm1536, %v1425, 0
  %v1544 = vsel %vm1536, %v1431, 0
  %v1547 = vsel %vm1536, %v1437, 0
  %vm1549 = vcmask 1045504
  %v1551 = vsel %vm1549, %v1531, 0
  %1553 = vmatpush.msra.mxu0 %v1453
  %1554 = vmatpush.msra.mxu0 %v1452
  %1555 = vmatpush.msra.mxu0 %v1451
  %1556 = vmatpush.msra.mxu0 %v1450
  %1557 = vmatpush.msra.mxu0 %v1449
  %1558 = vmatpush.msra.mxu0 %v1448
  %1559 = vmatpush.msra.mxu0 %v1447
  %1560 = vmatpush.msra.mxu0 %v1446
  %1561 = vmatpush.msra.mxu0 %v1445
  %1562 = vmatpush.msra.mxu0 %v1444
  %1563 = vmatpush.msra.mxu0 %v1443
  %1564 = vmatpush.msra.mxu0 %v1442
  %1565 = vmatpush.msra.mxu0 %v1441
  %1566 = vmatpush.msra.mxu0 %v1440
  %1567 = vmatpush.msra.mxu0 %v1439
  %1568 = vmatpush.msra.mxu0 %v1438
  %1569 = vmatmul.f32.gmra.mxu0 %v1414
  %v1570 = vpop.f32.mrf.mxu0
  %v1571 = vadd.f32 %v1534, %v1570
  %1572 = vmatmul.f32.gmra.mxu0 %v1420
  %v1573 = vpop.f32.mrf.mxu0
  %v1574 = vadd.f32 %v1534, %v1573
  %1575 = vmatmul.f32.gmra.mxu0 %v1426
  %v1576 = vpop.f32.mrf.mxu0
  %v1577 = vadd.f32 %v1534, %v1576
  %1578 = vmatmul.f32.gmra.mxu0 %v1432
  %v1579 = vpop.f32.mrf.mxu0
  %v1580 = vadd.f32 %v1534, %v1579
  %1581 = vdwg.mxu0
  %1582 = vmatpush.msra.mxu0 %v1469
  %1583 = vmatpush.msra.mxu0 %v1468
  %1584 = vmatpush.msra.mxu0 %v1467
  %1585 = vmatpush.msra.mxu0 %v1466
  %1586 = vmatpush.msra.mxu0 %v1465
  %1587 = vmatpush.msra.mxu0 %v1464
  %1588 = vmatpush.msra.mxu0 %v1463
  %1589 = vmatpush.msra.mxu0 %v1462
  %1590 = vmatpush.msra.mxu0 %v1461
  %1591 = vmatpush.msra.mxu0 %v1460
  %1592 = vmatpush.msra.mxu0 %v1459
  %1593 = vmatpush.msra.mxu0 %v1458
  %1594 = vmatpush.msra.mxu0 %v1457
  %1595 = vmatpush.msra.mxu0 %v1456
  %1596 = vmatpush.msra.mxu0 %v1455
  %1597 = vmatpush.msra.mxu0 %v1454
  %1598 = vmatmul.f32.gmra.mxu0 %v1415
  %v1599 = vpop.f32.mrf.mxu0
  %v1600 = vadd.f32 %v1571, %v1599
  %1601 = vmatmul.f32.gmra.mxu0 %v1421
  %v1602 = vpop.f32.mrf.mxu0
  %v1603 = vadd.f32 %v1574, %v1602
  %1604 = vmatmul.f32.gmra.mxu0 %v1427
  %v1605 = vpop.f32.mrf.mxu0
  %v1606 = vadd.f32 %v1577, %v1605
  %1607 = vmatmul.f32.gmra.mxu0 %v1433
  %v1608 = vpop.f32.mrf.mxu0
  %v1609 = vadd.f32 %v1580, %v1608
  %1610 = vdwg.mxu0
  %1611 = vmatpush.msra.mxu0 %v1485
  %1612 = vmatpush.msra.mxu0 %v1484
  %1613 = vmatpush.msra.mxu0 %v1483
  %1614 = vmatpush.msra.mxu0 %v1482
  %1615 = vmatpush.msra.mxu0 %v1481
  %1616 = vmatpush.msra.mxu0 %v1480
  %1617 = vmatpush.msra.mxu0 %v1479
  %1618 = vmatpush.msra.mxu0 %v1478
  %1619 = vmatpush.msra.mxu0 %v1477
  %1620 = vmatpush.msra.mxu0 %v1476
  %1621 = vmatpush.msra.mxu0 %v1475
  %1622 = vmatpush.msra.mxu0 %v1474
  %1623 = vmatpush.msra.mxu0 %v1473
  %1624 = vmatpush.msra.mxu0 %v1472
  %1625 = vmatpush.msra.mxu0 %v1471
  %1626 = vmatpush.msra.mxu0 %v1470
  %1627 = vmatmul.f32.gmra.mxu0 %v1416
  %v1628 = vpop.f32.mrf.mxu0
  %v1629 = vadd.f32 %v1600, %v1628
  %1630 = vmatmul.f32.gmra.mxu0 %v1422
  %v1631 = vpop.f32.mrf.mxu0
  %v1632 = vadd.f32 %v1603, %v1631
  %1633 = vmatmul.f32.gmra.mxu0 %v1428
  %v1634 = vpop.f32.mrf.mxu0
  %v1635 = vadd.f32 %v1606, %v1634
  %1636 = vmatmul.f32.gmra.mxu0 %v1434
  %v1637 = vpop.f32.mrf.mxu0
  %v1638 = vadd.f32 %v1609, %v1637
  %1639 = vdwg.mxu0
  %1640 = vmatpush.msra.mxu0 %v1501
  %1641 = vmatpush.msra.mxu0 %v1500
  %1642 = vmatpush.msra.mxu0 %v1499
  %1643 = vmatpush.msra.mxu0 %v1498
  %1644 = vmatpush.msra.mxu0 %v1497
  %1645 = vmatpush.msra.mxu0 %v1496
  %1646 = vmatpush.msra.mxu0 %v1495
  %1647 = vmatpush.msra.mxu0 %v1494
  %1648 = vmatpush.msra.mxu0 %v1493
  %1649 = vmatpush.msra.mxu0 %v1492
  %1650 = vmatpush.msra.mxu0 %v1491
  %1651 = vmatpush.msra.mxu0 %v1490
  %1652 = vmatpush.msra.mxu0 %v1489
  %1653 = vmatpush.msra.mxu0 %v1488
  %1654 = vmatpush.msra.mxu0 %v1487
  %1655 = vmatpush.msra.mxu0 %v1486
  %1656 = vmatmul.f32.gmra.mxu0 %v1417
  %v1657 = vpop.f32.mrf.mxu0
  %v1658 = vadd.f32 %v1629, %v1657
  %1659 = vmatmul.f32.gmra.mxu0 %v1423
  %v1660 = vpop.f32.mrf.mxu0
  %v1661 = vadd.f32 %v1632, %v1660
  %1662 = vmatmul.f32.gmra.mxu0 %v1429
  %v1663 = vpop.f32.mrf.mxu0
  %v1664 = vadd.f32 %v1635, %v1663
  %1665 = vmatmul.f32.gmra.mxu0 %v1435
  %v1666 = vpop.f32.mrf.mxu0
  %v1667 = vadd.f32 %v1638, %v1666
  %1668 = vdwg.mxu0
  %1669 = vmatpush.msra.mxu0 %v1517
  %1670 = vmatpush.msra.mxu0 %v1516
  %1671 = vmatpush.msra.mxu0 %v1515
  %1672 = vmatpush.msra.mxu0 %v1514
  %1673 = vmatpush.msra.mxu0 %v1513
  %1674 = vmatpush.msra.mxu0 %v1512
  %1675 = vmatpush.msra.mxu0 %v1511
  %1676 = vmatpush.msra.mxu0 %v1510
  %1677 = vmatpush.msra.mxu0 %v1509
  %1678 = vmatpush.msra.mxu0 %v1508
  %1679 = vmatpush.msra.mxu0 %v1507
  %1680 = vmatpush.msra.mxu0 %v1506
  %1681 = vmatpush.msra.mxu0 %v1505
  %1682 = vmatpush.msra.mxu0 %v1504
  %1683 = vmatpush.msra.mxu0 %v1503
  %1684 = vmatpush.msra.mxu0 %v1502
  %1685 = vmatmul.f32.gmra.mxu0 %v1418
  %v1686 = vpop.f32.mrf.mxu0
  %v1687 = vadd.f32 %v1658, %v1686
  %1688 = vmatmul.f32.gmra.mxu0 %v1424
  %v1689 = vpop.f32.mrf.mxu0
  %v1690 = vadd.f32 %v1661, %v1689
  %1691 = vmatmul.f32.gmra.mxu0 %v1430
  %v1692 = vpop.f32.mrf.mxu0
  %v1693 = vadd.f32 %v1664, %v1692
  %1694 = vmatmul.f32.gmra.mxu0 %v1436
  %v1695 = vpop.f32.mrf.mxu0
  %v1696 = vadd.f32 %v1667, %v1695
  %1697 = vdwg.mxu0
  %1698 = vmatpush.msra.mxu0 0.0
  %1699 = vmatpush.msra.mxu0 0.0
  %1700 = vmatpush.msra.mxu0 %v1551
  %1701 = vmatpush.msra.mxu0 %v1530
  %1702 = vmatpush.msra.mxu0 %v1529
  %1703 = vmatpush.msra.mxu0 %v1528
  %1704 = vmatpush.msra.mxu0 %v1527
  %1705 = vmatpush.msra.mxu0 %v1526
  %1706 = vmatpush.msra.mxu0 %v1525
  %1707 = vmatpush.msra.mxu0 %v1524
  %1708 = vmatpush.msra.mxu0 %v1523
  %1709 = vmatpush.msra.mxu0 %v1522
  %1710 = vmatpush.msra.mxu0 %v1521
  %1711 = vmatpush.msra.mxu0 %v1520
  %1712 = vmatpush.msra.mxu0 %v1519
  %1713 = vmatpush.msra.mxu0 %v1518
  %1714 = vmatmul.f32.gmra.mxu0 %v1538
  %v1715 = vpop.f32.mrf.mxu0
  %v1716 = vadd.f32 %v1687, %v1715
  %1717 = vmatmul.f32.gmra.mxu0 %v1541
  %v1718 = vpop.f32.mrf.mxu0
  %v1719 = vadd.f32 %v1690, %v1718
  %1720 = vmatmul.f32.gmra.mxu0 %v1544
  %v1721 = vpop.f32.mrf.mxu0
  %v1722 = vadd.f32 %v1693, %v1721
  %1723 = vmatmul.f32.gmra.mxu0 %v1547
  %v1724 = vpop.f32.mrf.mxu0
  %v1725 = vadd.f32 %v1696, %v1724
  %1726 = vdwg.mxu0
  %v1727 = vmax.f32 %v1716, 0.0
  %v1728 = vmax.f32 %v1719, 0.0
  %v1729 = vmax.f32 %v1722, 0.0
  %v1730 = vmax.f32 %v1725, 0.0
  %vm1731 = vcmask 486400
  %1732 = vst.msk [vmem:[#allocation3] sm:$0xf] %vm1731, %v1727
  %v1734 = vrot.slane %v1728, 4
  %vm1736 = vcmask 490500
  %1737 = vst.msk [vmem:[#allocation3] sm:$0xf0] %vm1736, %v1734
  %v1739 = vrot.slane %v1727, 2
  %1740 = vrot.lane.b32.xlu0 %v1739, 60
  %v1741 = vpop.permute.xlu0 %1740
  %vm1743 = vcmask 978400
  %1744 = vst.msk [vmem:[#allocation3] sm:$0xf] %vm1743, %v1741
  %v1745 = vrot.slane %v1728, 6
  %1746 = vrot.lane.b32.xlu0 %v1745, 60
  %v1747 = vpop.permute.xlu0 %1746
  %vm1749 = vcmask 982500
  %1750 = vst.msk [vmem:[#allocation3] sm:$0xf0] %vm1749, %v1747
  %v1751 = vrot.slane %v1727, 4
  %1752 = vrot.lane.b32.xlu0 %v1751, 120
  %v1753 = vpop.permute.xlu0 %1752
  %vm1755 = vcmask 1044416
  %1756 = vst.msk [vmem:[#allocation3] sm:$0xf] %vm1755, %v1753
  %vm1757 = vcmask 420864
  %1758 = vst.msk [vmem:[#allocation3 + $0x8] sm:$0xf] %vm1757, %v1753
  %1759 = vrot.lane.b32.xlu0 %v1728, 120
  %v1760 = vpop.permute.xlu0 %1759
  %vm1762 = vcmask 1048516
  %1763 = vst.msk [vmem:[#allocation3] sm:$0xf0] %vm1762, %v1760
  %vm1764 = vcmask 424964
  %1765 = vst.msk [vmem:[#allocation3 + $0x8] sm:$0xf0] %vm1764, %v1760
  %1766 = vrot.lane.b32.xlu0 %v1728, 52
  %v1767 = vpop.permute.xlu0 %1766
  %vm1769 = vcmask 912800
  %1770 = vst.msk [vmem:[#allocation3 + $0x8] sm:$0xf] %vm1769, %v1767
  %v1772 = vrot.slane %v1729, 4
  %1773 = vrot.lane.b32.xlu0 %v1772, 52
  %v1774 = vpop.permute.xlu0 %1773
  %vm1776 = vcmask 916900
  %1777 = vst.msk [vmem:[#allocation3 + $0x8] sm:$0xf0] %vm1776, %v1774
  %v1778 = vrot.slane %v1728, 2
  %1779 = vrot.lane.b32.xlu0 %v1778, 112
  %v1780 = vpop.permute.xlu0 %1779
  %vm1782 = vcmask 1044352
  %1783 = vst.msk [vmem:[#allocation3 + $0x8] sm:$0xf] %vm1782, %v1780
  %vm1784 = vcmask 355328
  %1785 = vst.msk [vmem:[#allocation3 + $0x10] sm:$0xf] %vm1784, %v1780
  %v1786 = vrot.slane %v1729, 6
  %1787 = vrot.lane.b32.xlu0 %v1786, 112
  %v1788 = vpop.permute.xlu0 %1787
  %vm1790 = vcmask 1048452
  %1791 = vst.msk [vmem:[#allocation3 + $0x8] sm:$0xf0] %vm1790, %v1788
  %vm1792 = vcmask 359428
  %1793 = vst.msk [vmem:[#allocation3 + $0x10] sm:$0xf0] %vm1792, %v1788
  %1794 = vrot.lane.b32.xlu0 %v1734, 44
  %v1795 = vpop.permute.xlu0 %1794
  %vm1797 = vcmask 847200
  %1798 = vst.msk [vmem:[#allocation3 + $0x10] sm:$0xf] %vm1797, %v1795
  %1799 = vrot.lane.b32.xlu0 %v1729, 44
  %v1800 = vpop.permute.xlu0 %1799
  %vm1802 = vcmask 851300
  %1803 = vst.msk [vmem:[#allocation3 + $0x10] sm:$0xf0] %vm1802, %v1800
  %1804 = vrot.lane.b32.xlu0 %v1729, 104
  %v1805 = vpop.permute.xlu0 %1804
  %vm1807 = vcmask 1044288
  %1808 = vst.msk [vmem:[#allocation3 + $0x10] sm:$0xf] %vm1807, %v1805
  %vm1809 = vcmask 289792
  %1810 = vst.msk [vmem:[#allocation3 + $0x18] sm:$0xf] %vm1809, %v1805
  %v1812 = vrot.slane %v1730, 4
  %1813 = vrot.lane.b32.xlu0 %v1812, 104
  %v1814 = vpop.permute.xlu0 %1813
  %vm1816 = vcmask 1048388
  %1817 = vst.msk [vmem:[#allocation3 + $0x10] sm:$0xf0] %vm1816, %v1814
  %vm1818 = vcmask 293892
  %1819 = vst.msk [vmem:[#allocation3 + $0x18] sm:$0xf0] %vm1818, %v1814
  %v1820 = vrot.slane %v1729, 2
  %1821 = vrot.lane.b32.xlu0 %v1820, 36
  %v1822 = vpop.permute.xlu0 %1821
  %vm1824 = vcmask 781600
  %1825 = vst.msk [vmem:[#allocation3 + $0x18] sm:$0xf] %vm1824, %v1822
  %v1826 = vrot.slane %v1730, 6
  %1827 = vrot.lane.b32.xlu0 %v1826, 36
  %v1828 = vpop.permute.xlu0 %1827
  %vm1830 = vcmask 785700
  %1831 = vst.msk [vmem:[#allocation3 + $0x18] sm:$0xf0] %vm1830, %v1828
  %1832 = vrot.lane.b32.xlu0 %v1772, 96
  %v1833 = vpop.permute.xlu0 %1832
  %vm1835 = vcmask 1044224
  %1836 = vst.msk [vmem:[#allocation3 + $0x18] sm:$0xf] %vm1835, %v1833
  %vm1837 = vcmask 224256
  %1838 = vst.msk [vmem:[#allocation3 + $0x20] sm:$0xf] %vm1837, %v1833
  %1839 = vrot.lane.b32.xlu0 %v1730, 96
  %v1840 = vpop.permute.xlu0 %1839
  %vm1842 = vcmask 1048324
  %1843 = vst.msk [vmem:[#allocation3 + $0x18] sm:$0xf0] %vm1842, %v1840
  %vm1844 = vcmask 228356
  %1845 = vst.msk [vmem:[#allocation3 + $0x20] sm:$0xf0] %vm1844, %v1840
  %v1846 = vld [vmem:[#allocation3] sm:$0xff]
  %v1847 = vld [vmem:[#allocation3 + $0x8] sm:$0xff]
  %v1848 = vld [vmem:[#allocation3 + $0x10] sm:$0xff]
  %v1849 = vld [vmem:[#allocation3 + $0x18] sm:$0xff]
  %v1850 = vld [vmem:[#allocation3 + $0x20] sm:$0xff]
  %v1851 = vld [vmem:[%s5] sm:$0xff]
  %v1852 = vld [vmem:[%s5 + $0x8] sm:$0xff]
  %v1853 = vld [vmem:[%s5 + $0x10] sm:$0xff]
  %v1854 = vld [vmem:[%s5 + $0x18] sm:$0xff]
  %v1855 = vld [vmem:[%s5 + $0x20] sm:$0xff]
  %v1856 = vld [vmem:[%s5 + $0x28] sm:$0xff]
  %v1857 = vld [vmem:[%s5 + $0x30] sm:$0xff]
  %v1858 = vld [vmem:[%s5 + $0x38] sm:$0xff]
  %v1859 = vld [vmem:[%s5 + $0x40] sm:$0xff]
  %v1860 = vld [vmem:[%s5 + $0x48] sm:$0xff]
  %v1861 = vld [vmem:[%s5 + $0x50] sm:$0xff]
  %v1862 = vld [vmem:[%s5 + $0x58] sm:$0xff]
  %v1863 = vld [vmem:[%s5 + $0x60] sm:$0xff]
  %v1864 = vld [vmem:[%s5 + $0x68] sm:$0xff]
  %v1865 = vld [vmem:[%s5 + $0x70] sm:$0xff]
  %v1866 = vld [vmem:[%s5 + $0x78] sm:$0xff]
  %v1867 = vld [vmem:[%s5 + $0x80] sm:$0xff]
  %v1868 = vld [vmem:[%s5 + $0x88] sm:$0xff]
  %v1869 = vld [vmem:[%s5 + $0x90] sm:$0xff]
  %v1870 = vld [vmem:[%s5 + $0x98] sm:$0xff]
  %v1871 = vld [vmem:[%s5 + $0xa0] sm:$0xff]
  %v1872 = vld [vmem:[%s5 + $0xa8] sm:$0xff]
  %v1873 = vld [vmem:[%s5 + $0xb0] sm:$0xff]
  %v1874 = vld [vmem:[%s5 + $0xb8] sm:$0xff]
  %v1875 = vld [vmem:[%s5 + $0xc0] sm:$0xff]
  %v1876 = vld [vmem:[%s5 + $0xc8] sm:$0xff]
  %v1877 = vld [vmem:[%s5 + $0xd0] sm:$0xff]
  %v1878 = vld [vmem:[%s5 + $0xd8] sm:$0xff]
  %v1879 = vld [vmem:[%s5 + $0xe0] sm:$0xff]
  %v1880 = vld [vmem:[%s5 + $0xe8] sm:$0xff]
  %v1881 = vld [vmem:[%s5 + $0xf0] sm:$0xff]
  %v1882 = vld [vmem:[%s5 + $0xf8] sm:$0xff]
  %v1883 = vld [vmem:[%s5 + $0x100] sm:$0xff]
  %v1884 = vld [vmem:[%s5 + $0x108] sm:$0xff]
  %v1885 = vld [vmem:[%s5 + $0x110] sm:$0xff]
  %v1886 = vld [vmem:[%s5 + $0x118] sm:$0xff]
  %v1887 = vld [vmem:[%s5 + $0x120] sm:$0xff]
  %v1888 = vld [vmem:[%s5 + $0x128] sm:$0xff]
  %v1889 = vld [vmem:[%s5 + $0x130] sm:$0xff]
  %v1890 = vld [vmem:[%s5 + $0x138] sm:$0xff]
  %v1891 = vld [vmem:[%s5 + $0x140] sm:$0xff]
  %v1892 = vld [vmem:[%s5 + $0x148] sm:$0xff]
  %v1893 = vld [vmem:[%s5 + $0x150] sm:$0xff]
  %v1894 = vld [vmem:[%s5 + $0x158] sm:$0xff]
  %v1895 = vld [vmem:[%s5 + $0x160] sm:$0xff]
  %v1896 = vld [vmem:[%s5 + $0x168] sm:$0xff]
  %v1897 = vld [vmem:[%s5 + $0x170] sm:$0xff]
  %v1898 = vld [vmem:[%s5 + $0x178] sm:$0xff]
  %v1899 = vld [vmem:[%s5 + $0x180] sm:$0xff]
  %v1900 = vld [vmem:[%s5 + $0x188] sm:$0xff]
  %v1901 = vld [vmem:[%s5 + $0x190] sm:$0xff]
  %v1902 = vld [vmem:[%s5 + $0x198] sm:$0xff]
  %v1903 = vld [vmem:[%s5 + $0x1a0] sm:$0xff]
  %v1904 = vld [vmem:[%s5 + $0x1a8] sm:$0xff]
  %v1905 = vld [vmem:[%s5 + $0x1b0] sm:$0xff]
  %v1906 = vld [vmem:[%s5 + $0x1b8] sm:$0xff]
  %v1907 = vld [vmem:[%s5 + $0x1c0] sm:$0xff]
  %v1908 = vld [vmem:[%s5 + $0x1c8] sm:$0xff]
  %v1909 = vld [vmem:[%s5 + $0x1d0] sm:$0xff]
  %v1910 = vld [vmem:[%s5 + $0x1d8] sm:$0xff]
  %v1911 = vld [vmem:[%s5 + $0x1e0] sm:$0xff]
  %v1912 = vld [vmem:[%s5 + $0x1e8] sm:$0xff]
  %v1913 = vld [vmem:[%s5 + $0x1f0] sm:$0xff]
  %v1914 = vld [vmem:[%s5 + $0x1f8] sm:$0xff]
  %v1915 = vld [vmem:[%s5 + $0x200] sm:$0xff]
  %v1916 = vld [vmem:[%s5 + $0x208] sm:$0xff]
  %v1917 = vld [vmem:[%s5 + $0x210] sm:$0xff]
  %v1918 = vld [vmem:[%s5 + $0x218] sm:$0xf]
  %v1919 = vld [vmem:[%s6] sm:$0x1]
  %v1921 = vperm.slane %v1919, 0
  %v1924 = vsel %vm1254, %v1850, 0
  %vm1926 = vcmask 1043456
  %v1928 = vsel %vm1926, %v1918, 0
  %1930 = vmatpush.msra.mxu0 %v1866
  %1931 = vmatpush.msra.mxu0 %v1865
  %1932 = vmatpush.msra.mxu0 %v1864
  %1933 = vmatpush.msra.mxu0 %v1863
  %1934 = vmatpush.msra.mxu0 %v1862
  %1935 = vmatpush.msra.mxu0 %v1861
  %1936 = vmatpush.msra.mxu0 %v1860
  %1937 = vmatpush.msra.mxu0 %v1859
  %1938 = vmatpush.msra.mxu0 %v1858
  %1939 = vmatpush.msra.mxu0 %v1857
  %1940 = vmatpush.msra.mxu0 %v1856
  %1941 = vmatpush.msra.mxu0 %v1855
  %1942 = vmatpush.msra.mxu0 %v1854
  %1943 = vmatpush.msra.mxu0 %v1853
  %1944 = vmatpush.msra.mxu0 %v1852
  %1945 = vmatpush.msra.mxu0 %v1851
  %1946 = vmatmul.f32.gmra.mxu0 %v1846
  %v1947 = vpop.f32.mrf.mxu0
  %v1948 = vadd.f32 %v1921, %v1947
  %1949 = vdwg.mxu0
  %1950 = vmatpush.msra.mxu0 %v1882
  %1951 = vmatpush.msra.mxu0 %v1881
  %1952 = vmatpush.msra.mxu0 %v1880
  %1953 = vmatpush.msra.mxu0 %v1879
  %1954 = vmatpush.msra.mxu0 %v1878
  %1955 = vmatpush.msra.mxu0 %v1877
  %1956 = vmatpush.msra.mxu0 %v1876
  %1957 = vmatpush.msra.mxu0 %v1875
  %1958 = vmatpush.msra.mxu0 %v1874
  %1959 = vmatpush.msra.mxu0 %v1873
  %1960 = vmatpush.msra.mxu0 %v1872
  %1961 = vmatpush.msra.mxu0 %v1871
  %1962 = vmatpush.msra.mxu0 %v1870
  %1963 = vmatpush.msra.mxu0 %v1869
  %1964 = vmatpush.msra.mxu0 %v1868
  %1965 = vmatpush.msra.mxu0 %v1867
  %1966 = vmatmul.f32.gmra.mxu0 %v1847
  %v1967 = vpop.f32.mrf.mxu0
  %v1968 = vadd.f32 %v1948, %v1967
  %1969 = vdwg.mxu0
  %1970 = vmatpush.msra.mxu0 %v1898
  %1971 = vmatpush.msra.mxu0 %v1897
  %1972 = vmatpush.msra.mxu0 %v1896
  %1973 = vmatpush.msra.mxu0 %v1895
  %1974 = vmatpush.msra.mxu0 %v1894
  %1975 = vmatpush.msra.mxu0 %v1893
  %1976 = vmatpush.msra.mxu0 %v1892
  %1977 = vmatpush.msra.mxu0 %v1891
  %1978 = vmatpush.msra.mxu0 %v1890
  %1979 = vmatpush.msra.mxu0 %v1889
  %1980 = vmatpush.msra.mxu0 %v1888
  %1981 = vmatpush.msra.mxu0 %v1887
  %1982 = vmatpush.msra.mxu0 %v1886
  %1983 = vmatpush.msra.mxu0 %v1885
  %1984 = vmatpush.msra.mxu0 %v1884
  %1985 = vmatpush.msra.mxu0 %v1883
  %1986 = vmatmul.f32.gmra.mxu0 %v1848
  %v1987 = vpop.f32.mrf.mxu0
  %v1988 = vadd.f32 %v1968, %v1987
  %1989 = vdwg.mxu0
  %1990 = vmatpush.msra.mxu0 %v1914
  %1991 = vmatpush.msra.mxu0 %v1913
  %1992 = vmatpush.msra.mxu0 %v1912
  %1993 = vmatpush.msra.mxu0 %v1911
  %1994 = vmatpush.msra.mxu0 %v1910
  %1995 = vmatpush.msra.mxu0 %v1909
  %1996 = vmatpush.msra.mxu0 %v1908
  %1997 = vmatpush.msra.mxu0 %v1907
  %1998 = vmatpush.msra.mxu0 %v1906
  %1999 = vmatpush.msra.mxu0 %v1905
  %2000 = vmatpush.msra.mxu0 %v1904
  %2001 = vmatpush.msra.mxu0 %v1903
  %2002 = vmatpush.msra.mxu0 %v1902
  %2003 = vmatpush.msra.mxu0 %v1901
  %2004 = vmatpush.msra.mxu0 %v1900
  %2005 = vmatpush.msra.mxu0 %v1899
  %2006 = vmatmul.f32.gmra.mxu0 %v1849
  %v2007 = vpop.f32.mrf.mxu0
  %v2008 = vadd.f32 %v1988, %v2007
  %2009 = vdwg.mxu0
  %2010 = vmatpush.msra.mxu0 0.0
  %2011 = vmatpush.msra.mxu0 0.0
  %2012 = vmatpush.msra.mxu0 0.0
  %2013 = vmatpush.msra.mxu0 0.0
  %2014 = vmatpush.msra.mxu0 0.0
  %2015 = vmatpush.msra.mxu0 0.0
  %2016 = vmatpush.msra.mxu0 0.0
  %2017 = vmatpush.msra.mxu0 0.0
  %2018 = vmatpush.msra.mxu0 0.0
  %2019 = vmatpush.msra.mxu0 0.0
  %2020 = vmatpush.msra.mxu0 0.0
  %2021 = vmatpush.msra.mxu0 0.0
  %2022 = vmatpush.msra.mxu0 %v1928
  %2023 = vmatpush.msra.mxu0 %v1917
  %2024 = vmatpush.msra.mxu0 %v1916
  %2025 = vmatpush.msra.mxu0 %v1915
  %2026 = vmatmul.f32.gmra.mxu0 %v1924
  %v2027 = vpop.f32.mrf.mxu0
  %v2028 = vadd.f32 %v2008, %v2027
  %2029 = vdwg.mxu0
  %v2030 = vmax.f32 %v2028, 0.0
  %vm2031 = vcmask 484352
  %2032 = vst.msk [vmem:[#allocation4] sm:$0x3] %vm2031, %v2030
  %2034 = vst.sshfl [vmem:[#allocation1] sm:$0xff pattern:$0x73625140] %v2030
  %s2035 = scalar_lea.vmem [#allocation1], 1
  %v2036 = vld [vmem:[%s2035] ss:$4 sm:$0xff]
  %2037 = vrot.lane.b32.xlu0 %v2036, 60
  %v2038 = vpop.permute.xlu0 %2037
  %vm2040 = vcmask 976352
  %2041 = vst.msk [vmem:[#allocation4] sm:$0x3] %vm2040, %v2038
  %2042 = vst.sshfl [vmem:[#allocation1] sm:$0xff pattern:$0x73625140] %v2030
  %s2043 = scalar_lea.vmem [#allocation1], 2
  %v2044 = vld [vmem:[%s2043] ss:$4 sm:$0xff]
  %2045 = vrot.lane.b32.xlu0 %v2044, 120
  %v2046 = vpop.permute.xlu0 %2045
  %v2047 = vrot.slane %v2046, 6
  %vm2048 = vcmask 982016
  %v2049 = vsel %vm2048, %v2047, %v2046
  %vm2051 = vcmask 1042368
  %vm2052 = vcmask 420866
  %vm2053 = vmor %vm2052, %vm2051
  %2054 = vst.msk [vmem:[#allocation4] sm:$0xf] %vm2053, %v2049
  %2055 = vst.sshfl [vmem:[#allocation1] sm:$0xff pattern:$0x73625140] %v2030
  %s2056 = scalar_lea.vmem [#allocation1], 3
  %v2057 = vld [vmem:[%s2056] ss:$4 sm:$0xff]
  %2058 = vrot.lane.b32.xlu0 %v2057, 52
  %v2059 = vpop.permute.xlu0 %2058
  %vm2061 = vcmask 910752
  %2062 = vst.msk [vmem:[#allocation4 + $0x2] sm:$0x3] %vm2061, %v2059
  %v2063 = vld [vmem:[#allocation4] sm:$0xf]
  %v2064 = vld [vmem:[%s7] sm:$0xff]
  %v2065 = vld [vmem:[%s7 + $0x8] sm:$0xff]
  %v2066 = vld [vmem:[%s7 + $0x10] sm:$0xff]
  %v2067 = vld [vmem:[%s7 + $0x18] sm:$0xff]
  %v2068 = vld [vmem:[%s7 + $0x20] sm:$0xff]
  %v2069 = vld [vmem:[%s7 + $0x28] sm:$0xff]
  %v2070 = vld [vmem:[%s7 + $0x30] sm:$0xff]
  %v2071 = vld [vmem:[%s7 + $0x38] sm:$0xff]
  %v2072 = vld [vmem:[%s7 + $0x40] sm:$0xff]
  %v2073 = vld [vmem:[%s7 + $0x48] sm:$0xff]
  %v2074 = vld [vmem:[%s7 + $0x50] sm:$0xff]
  %v2075 = vld [vmem:[%s7 + $0x58] sm:$0xff]
  %v2076 = vld [vmem:[%s7 + $0x60] sm:$0xff]
  %v2077 = vld [vmem:[%s7 + $0x68] sm:$0xff]
  %v2078 = vld [vmem:[%s7 + $0x70] sm:$0xff]
  %v2079 = vld [vmem:[%s7 + $0x78] sm:$0xff]
  %v2080 = vld [vmem:[%s7 + $0x80] sm:$0xff]
  %v2081 = vld [vmem:[%s7 + $0x88] sm:$0xff]
  %v2082 = vld [vmem:[%s7 + $0x90] sm:$0xff]
  %v2083 = vld [vmem:[%s7 + $0x98] sm:$0xff]
  %v2084 = vld [vmem:[%s7 + $0xa0] sm:$0xff]
  %v2085 = vld [vmem:[%s7 + $0xa8] sm:$0xff]
  %v2086 = vld [vmem:[%s7 + $0xb0] sm:$0xff]
  %v2087 = vld [vmem:[%s7 + $0xb8] sm:$0xff]
  %v2088 = vld [vmem:[%s7 + $0xc0] sm:$0xff]
  %v2089 = vld [vmem:[%s7 + $0xc8] sm:$0xff]
  %v2090 = vld [vmem:[%s7 + $0xd0] sm:$0xff]
  %v2091 = vld [vmem:[%s7 + $0xd8] sm:$0xff]
  %v2092 = vld [vmem:[%s7 + $0xe0] sm:$0xff]
  %v2093 = vld [vmem:[%s7 + $0xe8] sm:$0xff]
  %v2094 = vld [vmem:[%s8] sm:$0x1]
  %v2096 = vperm.slane %v2094, 0
  %2099 = vst [vmem:[#allocation1] ss:$4 sm:$0xff] %v2063
  %v2100 = vld.sshfl [vmem:[#allocation1] sm:$0xff pattern:$0x73625140]
  %v2101 = vld.sshfl [vmem:[#allocation1 + $0x8] sm:$0xff pattern:$0x73625140]
  %vm2103 = vcmask 916480
  %v2104 = vsel %vm2103, %v2101, 0
  %2106 = vmatpush.msra.mxu0 %v2079
  %2107 = vmatpush.msra.mxu0 %v2078
  %2108 = vmatpush.msra.mxu0 %v2077
  %2109 = vmatpush.msra.mxu0 %v2076
  %2110 = vmatpush.msra.mxu0 %v2075
  %2111 = vmatpush.msra.mxu0 %v2074
  %2112 = vmatpush.msra.mxu0 %v2073
  %2113 = vmatpush.msra.mxu0 %v2072
  %2114 = vmatpush.msra.mxu0 %v2071
  %2115 = vmatpush.msra.mxu0 %v2070
  %2116 = vmatpush.msra.mxu0 %v2069
  %2117 = vmatpush.msra.mxu0 %v2068
  %2118 = vmatpush.msra.mxu0 %v2067
  %2119 = vmatpush.msra.mxu0 %v2066
  %2120 = vmatpush.msra.mxu0 %v2065
  %2121 = vmatpush.msra.mxu0 %v2064
  %2122 = vmatmul.f32.gmra.mxu0 %v2100
  %v2123 = vpop.f32.mrf.mxu0
  %v2124 = vadd.f32 %v2096, %v2123
  %2125 = vdwg.mxu0
  %2126 = vmatpush.msra.mxu0 0.0
  %2127 = vmatpush.msra.mxu0 0.0
  %2128 = vmatpush.msra.mxu0 %v2093
  %2129 = vmatpush.msra.mxu0 %v2092
  %2130 = vmatpush.msra.mxu0 %v2091
  %2131 = vmatpush.msra.mxu0 %v2090
  %2132 = vmatpush.msra.mxu0 %v2089
  %2133 = vmatpush.msra.mxu0 %v2088
  %2134 = vmatpush.msra.mxu0 %v2087
  %2135 = vmatpush.msra.mxu0 %v2086
  %2136 = vmatpush.msra.mxu0 %v2085
  %2137 = vmatpush.msra.mxu0 %v2084
  %2138 = vmatpush.msra.mxu0 %v2083
  %2139 = vmatpush.msra.mxu0 %v2082
  %2140 = vmatpush.msra.mxu0 %v2081
  %2141 = vmatpush.msra.mxu0 %v2080
  %2142 = vmatmul.f32.gmra.mxu0 %v2104
  %v2143 = vpop.f32.mrf.mxu0
  %v2144 = vadd.f32 %v2124, %v2143
  %2145 = vdwg.mxu0
  %v2146 = vmax.f32 %v2144, 0.0
  %v2147 = vld [vmem:[%s9] sm:$0xff]
  %v2148 = vld [vmem:[%s9 + $0x8] sm:$0xff]
  %v2149 = vld [vmem:[%s9 + $0x10] sm:$0xff]
  %v2150 = vld [vmem:[%s9 + $0x18] sm:$0xff]
  %v2151 = vld [vmem:[%s9 + $0x20] sm:$0xff]
  %v2152 = vld [vmem:[%s9 + $0x28] sm:$0xff]
  %v2153 = vld [vmem:[%s9 + $0x30] sm:$0xff]
  %v2154 = vld [vmem:[%s9 + $0x38] sm:$0xff]
  %v2155 = vld [vmem:[%s10] sm:$0x1]
  %v2157 = vperm.slane %v2155, 0
  %vm2159 = vcmask 523264
  %v2161 = vsel %vm2159, %v2146, 0
  %2163 = vmatpush.msra.mxu0 0.0
  %2164 = vmatpush.msra.mxu0 0.0
  %2165 = vmatpush.msra.mxu0 0.0
  %2166 = vmatpush.msra.mxu0 0.0
  %2167 = vmatpush.msra.mxu0 0.0
  %2168 = vmatpush.msra.mxu0 0.0
  %2169 = vmatpush.msra.mxu0 0.0
  %2170 = vmatpush.msra.mxu0 0.0
  %2171 = vmatpush.msra.mxu0 %v2154
  %2172 = vmatpush.msra.mxu0 %v2153
  %2173 = vmatpush.msra.mxu0 %v2152
  %2174 = vmatpush.msra.mxu0 %v2151
  %2175 = vmatpush.msra.mxu0 %v2150
  %2176 = vmatpush.msra.mxu0 %v2149
  %2177 = vmatpush.msra.mxu0 %v2148
  %2178 = vmatpush.msra.mxu0 %v2147
  %2179 = vmatmul.f32.gmra.mxu0 %v2161
  %v2180 = vpop.f32.mrf.mxu0
  %v2181 = vadd.f32 %v2157, %v2180
  %2182 = vdwg.mxu0
  %v2183 = vmax.f32 %v2181, 0.0
  %v2184 = vld [vmem:[%s11] sm:$0xff]
  %v2185 = vld [vmem:[%s11 + $0x8] sm:$0xff]
  %v2186 = vld [vmem:[%s11 + $0x10] sm:$0xff]
  %v2187 = vld [vmem:[%s11 + $0x18] sm:$0xff]
  %v2188 = vld [vmem:[%s11 + $0x20] sm:$0xff]
  %v2189 = vld [vmem:[%s11 + $0x28] sm:$0xff]
  %v2190 = vld [vmem:[%s11 + $0x30] sm:$0xff]
  %v2191 = vld [vmem:[%s11 + $0x38] sm:$0xff]
  %v2192 = vld [vmem:[%s12] sm:$0x1]
  %v2194 = vperm.slane %v2192, 0
  %v2197 = vsel %vm2159, %v2183, 0
  %2199 = vmatpush.msra.mxu0 0.0
  %2200 = vmatpush.msra.mxu0 0.0
  %2201 = vmatpush.msra.mxu0 0.0
  %2202 = vmatpush.msra.mxu0 0.0
  %2203 = vmatpush.msra.mxu0 0.0
  %2204 = vmatpush.msra.mxu0 0.0
  %2205 = vmatpush.msra.mxu0 0.0
  %2206 = vmatpush.msra.mxu0 0.0
  %2207 = vmatpush.msra.mxu0 %v2191
  %2208 = vmatpush.msra.mxu0 %v2190
  %2209 = vmatpush.msra.mxu0 %v2189
  %2210 = vmatpush.msra.mxu0 %v2188
  %2211 = vmatpush.msra.mxu0 %v2187
  %2212 = vmatpush.msra.mxu0 %v2186
  %2213 = vmatpush.msra.mxu0 %v2185
  %2214 = vmatpush.msra.mxu0 %v2184
  %2215 = vmatmul.f32.gmra.mxu0 %v2197
  %v2216 = vpop.f32.mrf.mxu0
  %v2217 = vadd.f32 %v2194, %v2216
  %2218 = vdwg.mxu0
  %2219 = vst [vmem:[%s13] sm:$0x3] %v2217
  // Predicated region
  $region54: #{forward.1} parent=0 // pred_check
    _
  $region55: #{forward.1} parent=0 // pred_check_branch
    %2221 = sbr.rel (0) target = $region57
  $region56: #{forward.1} parent=0 // pred_region
    _
  $region57: #{forward.1} parent=0 // pred_fallthru
    _
  // Predicated region
  $region58: #{forward.1} parent=0 // pred_check
    _
  $region59: #{forward.1} parent=0 // pred_check_branch
    %2223 = sbr.rel (0) target = $region61
  $region60: #{forward.1} parent=0 // pred_region
    _
  $region61: #{forward.1} parent=0 // pred_fallthru
    _

</llo_original>
